<compile_context>
chip_gen: v7x
topology: tpu7x:2x2x1
jax: 0.10.0
libtpu: 0.0.40
codegen_flags: <defaults>
</compile_context>

<pallas_src>
import functools

import jax
import jax.numpy as jnp
import numpy as np
from jax.experimental import pallas as pl
from jax.experimental.pallas import tpu as pltpu


PARAM_ORDER = [
    "w_e1", "b_e1", "w_e2", "b_e2",          # encoder: Linear->Sigmoid->Linear->Sigmoid
    "w_mu", "b_mu", "w_lv", "b_lv",          # get_mu / get_logvar heads
    "w_fc1", "b_fc1",                        # fc1
    "w_v", "b_v", "w_u", "b_u",              # attention_V (tanh) / attention_U (sigmoid)
    "w_aw_row", "b_aw",                      # attention_weights (stored as (1, D) row)
    "w_fc2", "b_fc2",                        # fc2
    "w_out_row", "b_out",                    # fc_out (stored as (1, neurons) row)
]


def deep_mil_kernel(
    x_ref, eps_ref, mask_ref,
    we1_ref, be1_ref, we2_ref, be2_ref,
    wmu_ref, bmu_ref, wlv_ref, blv_ref,
    wfc1_ref, bfc1_ref,
    wv_ref, bv_ref, wu_ref, bu_ref,
    waw_ref, baw_ref,
    wfc2_ref, bfc2_ref,
    wout_ref, bout_ref,
    out_ref, zml_ref,
):
    bB, Np, D = x_ref.shape
    A = wmu_ref.shape[1]
    R = bB * Np
    cdt = we1_ref.dtype                       # matmul operand dtype (bf16 by default)
    dot = functools.partial(jnp.dot, preferred_element_type=jnp.float32)

    x = x_ref[...].reshape(R, D)              # merge all bags of the block (Np % 8 == 0)
    xb = x.astype(cdt)
    eps = eps_ref[...]                        # (Np, A) f32
    mask = mask_ref[...]                      # (Np, 1) f32, 1.0 for real instances

    # ---- encoder + variational heads, all bags at once -------------------
    # (torch calls the encoder twice on the same input -> identical, compute once)
    h1 = jax.nn.sigmoid(dot(xb, we1_ref[...]) + be1_ref[...])                # (R, H1)
    enc = jax.nn.sigmoid(dot(h1.astype(cdt), we2_ref[...]) + be2_ref[...])   # (R, H2)
    encb = enc.astype(cdt)
    mu = dot(encb, wmu_ref[...]) + bmu_ref[...]                              # (R, A) f32
    logvar = dot(encb, wlv_ref[...]) + blv_ref[...]                          # (R, A) f32
    eps_all = jnp.tile(eps, (bB, 1))          # shared reparam noise per bag
    z = mu + eps_all * jnp.exp(logvar * 0.5)  # f32 reparameterisation path

    # ---- gated attention scores, all bags at once -------------------------
    mil = (dot(xb, wfc1_ref[...]) + bfc1_ref[...]).astype(cdt)               # (R, A)
    a_v = jnp.tanh(dot(mil, wv_ref[...]) + bv_ref[...])                      # (R, D) f32
    a_u = jax.nn.sigmoid(dot(mil, wu_ref[...]) + bu_ref[...])                # (R, D) f32
    # attention_weights has fan-out 1: VPU multiply + lane reduction instead of
    # a 1-column MXU matmul.
    att = jnp.sum(a_v * a_u * waw_ref[...], axis=-1, keepdims=True) + baw_ref[...]

    # ---- per-bag masked softmax over instances + weighted pooling ---------
    # bags_per_step is small, so a static unrolled loop keeps everything 2D.
    m_rows = []
    for b in range(bB):
        att_b = att[b * Np:(b + 1) * Np]                     # (Np, 1)
        att_b = jnp.where(mask > 0.0, att_b, -1e30)          # mask padded instances
        att_b = att_b - jnp.max(att_b, axis=0, keepdims=True)
        p_b = jnp.exp(att_b) * mask
        w_b = p_b / jnp.sum(p_b, axis=0, keepdims=True)      # softmax over the bag
        z_b = z[b * Np:(b + 1) * Np]                         # (Np, A)
        m_rows.append(jnp.sum(w_b * z_b, axis=0, keepdims=True))  # A @ z -> (1, A)
    m = jnp.concatenate(m_rows, axis=0)                      # (bB, A)

    # ---- classifier head ---------------------------------------------------
    hid = jnp.maximum(dot(m.astype(cdt), wfc2_ref[...]) + bfc2_ref[...], 0.0)
    # TODO(synk): nn.Dropout(p) is identity in eval mode; training-time dropout not implemented.
    # fc_out has fan-out 1: VPU multiply + lane reduction.
    out = jax.nn.sigmoid(jnp.sum(hid * wout_ref[...], axis=-1, keepdims=True)
                         + bout_ref[...])                    # (bB, 1)

    out_ref[0] = out                                         # one (bB, 1) slab per step
    zml_ref[...] = jnp.concatenate([z, mu, logvar], axis=-1)  # lane-dense (R, 3A)


def _full_spec(arr):
    return pl.BlockSpec(arr.shape, lambda b, nd=arr.ndim: (0,) * nd)


def deep_mil_forward(x, eps, params, *, bags_per_step=None,
                     compute_dtype=jnp.bfloat16,
                     vmem_limit_bytes=64 * 1024 * 1024):
    """Fused auto_DeepMIL forward.

    x:   (B, N, D) float32 instance-major bags, i.e. in_features.transpose(-1, 1)
         of the PyTorch module (avoids an extra HBM transpose before the kernel).
    eps: (N, A) float32 reparameterisation noise (torch.randn(198, attention) analogue).
    Returns (out, z, mu, logvar) with shapes (B,1,1), (B,N,A), (B,N,A), (B,N,A).
    """
    B, N, D = x.shape
    A = params["w_mu"].shape[1]

    # Pad the bag dimension to a sublane multiple so all (rows, feat) tiles are aligned.
    Np = ((N + 7) // 8) * 8
    if bags_per_step is None:
        # Fill the MXU M dimension (~256 rows/step). NOTE(v5e): 128 rows already
        # saturate its 4x128 MXU; NOTE(v7x): shrink if VMEM (64 MiB) gets tight
        # at the full model sizes.
        bags_per_step = max(1, min(B, pl.cdiv(256, Np)))
    bB = bags_per_step
    G = pl.cdiv(B, bB)
    Bp = G * bB

    xp = jnp.pad(x.astype(jnp.float32), ((0, Bp - B), (0, Np - N), (0, 0)))
    eps_p = jnp.pad(eps.astype(jnp.float32), ((0, Np - N), (0, 0)))
    mask = (jnp.arange(Np) < N).astype(jnp.float32).reshape(Np, 1)

    cdt = compute_dtype
    p = params
    kparams = {
        "w_e1": p["w_e1"].astype(cdt), "b_e1": p["b_e1"],
        "w_e2": p["w_e2"].astype(cdt), "b_e2": p["b_e2"],
        "w_mu": p["w_mu"].astype(cdt), "b_mu": p["b_mu"],
        "w_lv": p["w_lv"].astype(cdt), "b_lv": p["b_lv"],
        "w_fc1": p["w_fc1"].astype(cdt), "b_fc1": p["b_fc1"],
        "w_v": p["w_v"].astype(cdt), "b_v": p["b_v"],
        "w_u": p["w_u"].astype(cdt), "b_u": p["b_u"],
        # fan-out-1 projections stay f32 and are applied on the VPU in-kernel
        "w_aw_row": p["w_aw"].reshape(1, -1).astype(jnp.float32), "b_aw": p["b_aw"],
        "w_fc2": p["w_fc2"].astype(cdt), "b_fc2": p["b_fc2"],
        "w_out_row": p["w_out"].reshape(1, -1).astype(jnp.float32), "b_out": p["b_out"],
    }
    weights = [kparams[k] for k in PARAM_ORDER]

    in_specs = (
        [pl.BlockSpec((bB, Np, D), lambda i: (i, 0, 0)),
         _full_spec(eps_p),
         _full_spec(mask)]
        + [_full_spec(w) for w in weights]
    )
    out_shapes = (
        jax.ShapeDtypeStruct((G, bB, 1), jnp.float32),          # classifier output per bag
        jax.ShapeDtypeStruct((Bp * Np, 3 * A), jnp.float32),    # [z | mu | logvar]
    )
    out_specs = [
        pl.BlockSpec((1, bB, 1), lambda i: (i, 0, 0)),
        pl.BlockSpec((bB * Np, 3 * A), lambda i: (i, 0)),
    ]

    out_raw, zml = pl.pallas_call(
        deep_mil_kernel,
        out_shape=out_shapes,
        grid_spec=pltpu.PrefetchScalarGridSpec(
            num_scalar_prefetch=0,
            grid=(G,),
            in_specs=in_specs,
            out_specs=out_specs,
        ),
        compiler_params=pltpu.CompilerParams(
            dimension_semantics=("parallel",),   # bags independent -> shard across TCs (v7x)
            vmem_limit_bytes=vmem_limit_bytes,
        ),
    )(xp, eps_p, mask, *weights)

    out = out_raw.reshape(Bp, 1)[:B].reshape(B, 1, 1)
    zml = zml.reshape(Bp, Np, 3 * A)[:B, :N, :]
    z, mu, logvar = zml[..., :A], zml[..., A:2 * A], zml[..., 2 * A:]
    return out, z, mu, logvar


def reference_forward(x, eps, p, compute_dtype=jnp.bfloat16):
    """Pure-JAX mirror of auto_DeepMIL.forward (eval-mode dropout), using the same
    mixed-precision policy as the kernel (compute_dtype MXU operands with f32
    accumulation; f32 attention-weight / softmax / reparam / fc_out math).
    x: (B, N, D) instance-major."""
    cdt = compute_dtype

    def mm(a, w):
        return jnp.dot(a.astype(cdt), w.astype(cdt), preferred_element_type=jnp.float32)

    with jax.default_matmul_precision("highest"):
        h1 = jax.nn.sigmoid(mm(x, p["w_e1"]) + p["b_e1"])
        enc = jax.nn.sigmoid(mm(h1, p["w_e2"]) + p["b_e2"])
        mu = mm(enc, p["w_mu"]) + p["b_mu"]
        logvar = mm(enc, p["w_lv"]) + p["b_lv"]
        z = mu + eps[None] * jnp.exp(logvar / 2)
        mil = mm(x, p["w_fc1"]) + p["b_fc1"]
        a_v = jnp.tanh(mm(mil, p["w_v"]) + p["b_v"])
        a_u = jax.nn.sigmoid(mm(mil, p["w_u"]) + p["b_u"])
        a = (a_v * a_u) @ p["w_aw"] + p["b_aw"]              # (B, N, 1) f32
        a = jnp.swapaxes(a, 1, 2)                            # (B, 1, N)
        a = jax.nn.softmax(a, axis=-1)
        m = a @ z                                            # (B, 1, A)
        hid = jax.nn.relu(mm(m, p["w_fc2"]) + p["b_fc2"])
        out = jax.nn.sigmoid(hid @ p["w_out"] + p["b_out"])  # (B, 1, 1)
    return out, z, mu, logvar


def make_params(key, D, A, H1, H2, neurons):
    ks = jax.random.split(key, 20)

    def lin(kw, fan_in, fan_out):
        w = jax.random.normal(kw, (fan_in, fan_out), jnp.float32) * 0.1
        b = jnp.zeros((1, fan_out), jnp.float32) + 0.01
        return w, b

    p = {}
    p["w_e1"], p["b_e1"] = lin(ks[0], D, H1)
    p["w_e2"], p["b_e2"] = lin(ks[1], H1, H2)
    p["w_mu"], p["b_mu"] = lin(ks[2], H2, A)
    p["w_lv"], p["b_lv"] = lin(ks[3], H2, A)
    p["w_fc1"], p["b_fc1"] = lin(ks[4], D, A)
    p["w_v"], p["b_v"] = lin(ks[5], A, D)
    p["w_u"], p["b_u"] = lin(ks[6], A, D)
    p["w_aw"], p["b_aw"] = lin(ks[7], D, 1)
    p["w_fc2"], p["b_fc2"] = lin(ks[8], A, neurons)
    p["w_out"], p["b_out"] = lin(ks[9], neurons, 1)
    return p


if __name__ == "__main__":
    # Small config consistent with the module:
    #   input_size(D)=32, attention(A)=16, neurons=8, encoder hidden 64/32
    #   (scaled stand-ins for the hard-coded 1024/512), bag size N=10, batch B=5.
    # B=5 / N=10 deliberately exercise the batch- and bag-padding + mask paths.
    B, N, D = 5, 10, 32
    A, H1, H2, NEURONS = 16, 64, 32, 8

    key = jax.random.PRNGKey(0)
    k_x, k_eps, k_p = jax.random.split(key, 3)

    # in_features in the torch module is (B, input_size, N); the kernel consumes the
    # instance-major layout (B, N, D) == in_features.transpose(-1, 1) directly.
    x = jax.random.normal(k_x, (B, N, D), jnp.float32)
    # torch.randn(198, attention) analogue, tied to the bag size N of this config.
    eps = jax.random.normal(k_eps, (N, A), jnp.float32)
    params = make_params(k_p, D, A, H1, H2, NEURONS)

    out, z, mu, logvar = deep_mil_forward(x, eps, params, bags_per_step=2)
    jax.block_until_ready((out, z, mu, logvar))

    # Strict check vs. a pure-JAX reference that uses the same mixed-precision policy.
    ref = reference_forward(x, eps, params, compute_dtype=jnp.bfloat16)
    for got, want in zip((out, z, mu, logvar), ref):
        np.testing.assert_allclose(np.asarray(got), np.asarray(want),
                                   rtol=2e-3, atol=2e-3)

    # Loose sanity check vs. the full-f32 semantics of the torch module
    # (difference is only the bf16 MXU operands).
    ref32 = reference_forward(x, eps, params, compute_dtype=jnp.float32)
    for got, want in zip((out, z, mu, logvar), ref32):
        np.testing.assert_allclose(np.asarray(got), np.asarray(want),
                                   rtol=5e-2, atol=5e-2)

    print("KERNEL_OK")
</pallas_src>

<mosaic_0001>
module attributes {stable_mosaic.version = 11 : i64} {
  func.func @deep_mil_kernel(%arg0: i32, %arg1: memref<2x16x32xf32, #tpu.memory_space<vmem>>, %arg2: memref<16x16xf32, #tpu.memory_space<vmem>>, %arg3: memref<16x1xf32, #tpu.memory_space<vmem>>, %arg4: memref<32x64xbf16, #tpu.memory_space<vmem>>, %arg5: memref<1x64xf32, #tpu.memory_space<vmem>>, %arg6: memref<64x32xbf16, #tpu.memory_space<vmem>>, %arg7: memref<1x32xf32, #tpu.memory_space<vmem>>, %arg8: memref<32x16xbf16, #tpu.memory_space<vmem>>, %arg9: memref<1x16xf32, #tpu.memory_space<vmem>>, %arg10: memref<32x16xbf16, #tpu.memory_space<vmem>>, %arg11: memref<1x16xf32, #tpu.memory_space<vmem>>, %arg12: memref<32x16xbf16, #tpu.memory_space<vmem>>, %arg13: memref<1x16xf32, #tpu.memory_space<vmem>>, %arg14: memref<16x32xbf16, #tpu.memory_space<vmem>>, %arg15: memref<1x32xf32, #tpu.memory_space<vmem>>, %arg16: memref<16x32xbf16, #tpu.memory_space<vmem>>, %arg17: memref<1x32xf32, #tpu.memory_space<vmem>>, %arg18: memref<1x32xf32, #tpu.memory_space<vmem>>, %arg19: memref<1x1xf32, #tpu.memory_space<vmem>>, %arg20: memref<16x8xbf16, #tpu.memory_space<vmem>>, %arg21: memref<1x8xf32, #tpu.memory_space<vmem>>, %arg22: memref<1x8xf32, #tpu.memory_space<vmem>>, %arg23: memref<1x1xf32, #tpu.memory_space<vmem>>, %arg24: memref<1x2x1xf32, #tpu.memory_space<vmem>>, %arg25: memref<32x48xf32, #tpu.memory_space<vmem>>) attributes {dimension_semantics = [#tpu.dimension_semantics<parallel>], iteration_bounds = array<i64: 3>, scalar_prefetch = 0 : i64, scratch_operands = 0 : i64, tpu.core_type = #tpu.core_type<tc>, window_params = [{transform_indices = @transform_0, window_bounds = array<i64: 2, 16, 32>}, {pipeline_mode = #tpu.pipeline_mode<synchronous>, transform_indices = @transform_1, window_bounds = array<i64: 16, 16>}, {pipeline_mode = #tpu.pipeline_mode<synchronous>, transform_indices = @transform_2, window_bounds = array<i64: 16, 1>}, {pipeline_mode = #tpu.pipeline_mode<synchronous>, transform_indices = @transform_3, window_bounds = array<i64: 32, 64>}, {pipeline_mode = #tpu.pipeline_mode<synchronous>, transform_indices = @transform_4, window_bounds = array<i64: 1, 64>}, {pipeline_mode = #tpu.pipeline_mode<synchronous>, transform_indices = @transform_5, window_bounds = array<i64: 64, 32>}, {pipeline_mode = #tpu.pipeline_mode<synchronous>, transform_indices = @transform_6, window_bounds = array<i64: 1, 32>}, {pipeline_mode = #tpu.pipeline_mode<synchronous>, transform_indices = @transform_7, window_bounds = array<i64: 32, 16>}, {pipeline_mode = #tpu.pipeline_mode<synchronous>, transform_indices = @transform_8, window_bounds = array<i64: 1, 16>}, {pipeline_mode = #tpu.pipeline_mode<synchronous>, transform_indices = @transform_9, window_bounds = array<i64: 32, 16>}, {pipeline_mode = #tpu.pipeline_mode<synchronous>, transform_indices = @transform_10, window_bounds = array<i64: 1, 16>}, {pipeline_mode = #tpu.pipeline_mode<synchronous>, transform_indices = @transform_11, window_bounds = array<i64: 32, 16>}, {pipeline_mode = #tpu.pipeline_mode<synchronous>, transform_indices = @transform_12, window_bounds = array<i64: 1, 16>}, {pipeline_mode = #tpu.pipeline_mode<synchronous>, transform_indices = @transform_13, window_bounds = array<i64: 16, 32>}, {pipeline_mode = #tpu.pipeline_mode<synchronous>, transform_indices = @transform_14, window_bounds = array<i64: 1, 32>}, {pipeline_mode = #tpu.pipeline_mode<synchronous>, transform_indices = @transform_15, window_bounds = array<i64: 16, 32>}, {pipeline_mode = #tpu.pipeline_mode<synchronous>, transform_indices = @transform_16, window_bounds = array<i64: 1, 32>}, {pipeline_mode = #tpu.pipeline_mode<synchronous>, transform_indices = @transform_17, window_bounds = array<i64: 1, 32>}, {pipeline_mode = #tpu.pipeline_mode<synchronous>, transform_indices = @transform_18, window_bounds = array<i64: 1, 1>}, {pipeline_mode = #tpu.pipeline_mode<synchronous>, transform_indices = @transform_19, window_bounds = array<i64: 16, 8>}, {pipeline_mode = #tpu.pipeline_mode<synchronous>, transform_indices = @transform_20, window_bounds = array<i64: 1, 8>}, {pipeline_mode = #tpu.pipeline_mode<synchronous>, transform_indices = @transform_21, window_bounds = array<i64: 1, 8>}, {pipeline_mode = #tpu.pipeline_mode<synchronous>, transform_indices = @transform_22, window_bounds = array<i64: 1, 1>}, {transform_indices = @transform_23, window_bounds = array<i64: 1, 2, 1>}, {transform_indices = @transform_24, window_bounds = array<i64: 32, 48>}]} {
    %c0 = arith.constant 0 : index
    %c0_0 = arith.constant 0 : index
    %c0_1 = arith.constant 0 : index
    %0 = vector.load %arg1[%c0, %c0_0, %c0_1] : memref<2x16x32xf32, #tpu.memory_space<vmem>>, vector<2x16x32xf32>
    %1 = vector.shape_cast %0 : vector<2x16x32xf32> to vector<32x32xf32>
    %2 = arith.truncf %1 : vector<32x32xf32> to vector<32x32xbf16>
    %c0_2 = arith.constant 0 : index
    %c0_3 = arith.constant 0 : index
    %3 = vector.load %arg2[%c0_2, %c0_3] : memref<16x16xf32, #tpu.memory_space<vmem>>, vector<16x16xf32>
    %c0_4 = arith.constant 0 : index
    %c0_5 = arith.constant 0 : index
    %4 = vector.load %arg3[%c0_4, %c0_5] : memref<16x1xf32, #tpu.memory_space<vmem>>, vector<16x1xf32>
    %c0_6 = arith.constant 0 : index
    %c0_7 = arith.constant 0 : index
    %5 = vector.load %arg4[%c0_6, %c0_7] : memref<32x64xbf16, #tpu.memory_space<vmem>>, vector<32x64xbf16>
    %cst = arith.constant dense<0.000000e+00> : vector<32x64xf32>
    %6 = tpu.matmul %2, %5, %cst {dimension_numbers = #tpu.dot_dimension_numbers<[1], [0], [0], [1], [0, 0, 1, 1], [], []>} : vector<32x32xbf16>, vector<32x64xbf16>, vector<32x64xf32> -> vector<32x64xf32>
    %c0_8 = arith.constant 0 : index
    %c0_9 = arith.constant 0 : index
    %7 = vector.load %arg5[%c0_8, %c0_9] : memref<1x64xf32, #tpu.memory_space<vmem>>, vector<1x64xf32>
    %8 = vector.broadcast %7 : vector<1x64xf32> to vector<32x64xf32>
    %9 = arith.addf %6, %8 : vector<32x64xf32>
    %10 = arith.negf %9 : vector<32x64xf32>
    %11 = math.exp %10 : vector<32x64xf32>
    %cst_10 = arith.constant 1.000000e+00 : f32
    %12 = vector.broadcast %cst_10 : f32 to vector<32x64xf32>
    %13 = arith.addf %12, %11 : vector<32x64xf32>
    %14 = arith.divf %12, %13 : vector<32x64xf32>
    %15 = arith.truncf %14 : vector<32x64xf32> to vector<32x64xbf16>
    %c0_11 = arith.constant 0 : index
    %c0_12 = arith.constant 0 : index
    %16 = vector.load %arg6[%c0_11, %c0_12] : memref<64x32xbf16, #tpu.memory_space<vmem>>, vector<64x32xbf16>
    %cst_13 = arith.constant dense<0.000000e+00> : vector<32x32xf32>
    %17 = tpu.matmul %15, %16, %cst_13 {dimension_numbers = #tpu.dot_dimension_numbers<[1], [0], [0], [1], [0, 0, 1, 1], [], []>} : vector<32x64xbf16>, vector<64x32xbf16>, vector<32x32xf32> -> vector<32x32xf32>
    %c0_14 = arith.constant 0 : index
    %c0_15 = arith.constant 0 : index
    %18 = vector.load %arg7[%c0_14, %c0_15] : memref<1x32xf32, #tpu.memory_space<vmem>>, vector<1x32xf32>
    %19 = vector.broadcast %18 : vector<1x32xf32> to vector<32x32xf32>
    %20 = arith.addf %17, %19 : vector<32x32xf32>
    %21 = arith.negf %20 : vector<32x32xf32>
    %22 = math.exp %21 : vector<32x32xf32>
    %cst_16 = arith.constant 1.000000e+00 : f32
    %23 = vector.broadcast %cst_16 : f32 to vector<32x32xf32>
    %24 = arith.addf %23, %22 : vector<32x32xf32>
    %25 = arith.divf %23, %24 : vector<32x32xf32>
    %26 = arith.truncf %25 : vector<32x32xf32> to vector<32x32xbf16>
    %c0_17 = arith.constant 0 : index
    %c0_18 = arith.constant 0 : index
    %27 = vector.load %arg8[%c0_17, %c0_18] : memref<32x16xbf16, #tpu.memory_space<vmem>>, vector<32x16xbf16>
    %cst_19 = arith.constant dense<0.000000e+00> : vector<32x16xf32>
    %28 = tpu.matmul %26, %27, %cst_19 {dimension_numbers = #tpu.dot_dimension_numbers<[1], [0], [0], [1], [0, 0, 1, 1], [], []>} : vector<32x32xbf16>, vector<32x16xbf16>, vector<32x16xf32> -> vector<32x16xf32>
    %c0_20 = arith.constant 0 : index
    %c0_21 = arith.constant 0 : index
    %29 = vector.load %arg9[%c0_20, %c0_21] : memref<1x16xf32, #tpu.memory_space<vmem>>, vector<1x16xf32>
    %30 = vector.broadcast %29 : vector<1x16xf32> to vector<32x16xf32>
    %31 = arith.addf %28, %30 : vector<32x16xf32>
    %c0_22 = arith.constant 0 : index
    %c0_23 = arith.constant 0 : index
    %32 = vector.load %arg10[%c0_22, %c0_23] : memref<32x16xbf16, #tpu.memory_space<vmem>>, vector<32x16xbf16>
    %cst_24 = arith.constant dense<0.000000e+00> : vector<32x16xf32>
    %33 = tpu.matmul %26, %32, %cst_24 {dimension_numbers = #tpu.dot_dimension_numbers<[1], [0], [0], [1], [0, 0, 1, 1], [], []>} : vector<32x32xbf16>, vector<32x16xbf16>, vector<32x16xf32> -> vector<32x16xf32>
    %c0_25 = arith.constant 0 : index
    %c0_26 = arith.constant 0 : index
    %34 = vector.load %arg11[%c0_25, %c0_26] : memref<1x16xf32, #tpu.memory_space<vmem>>, vector<1x16xf32>
    %35 = vector.broadcast %34 : vector<1x16xf32> to vector<32x16xf32>
    %36 = arith.addf %33, %35 : vector<32x16xf32>
    %37 = tpu.concatenate %3, %3 in 0 : vector<16x16xf32>, vector<16x16xf32> -> vector<32x16xf32>
    %cst_27 = arith.constant 5.000000e-01 : f32
    %38 = vector.broadcast %cst_27 : f32 to vector<32x16xf32>
    %39 = arith.mulf %36, %38 : vector<32x16xf32>
    %40 = math.exp %39 : vector<32x16xf32>
    %41 = arith.mulf %37, %40 : vector<32x16xf32>
    %42 = arith.addf %31, %41 : vector<32x16xf32>
    %c0_28 = arith.constant 0 : index
    %c0_29 = arith.constant 0 : index
    %43 = vector.load %arg12[%c0_28, %c0_29] : memref<32x16xbf16, #tpu.memory_space<vmem>>, vector<32x16xbf16>
    %cst_30 = arith.constant dense<0.000000e+00> : vector<32x16xf32>
    %44 = tpu.matmul %2, %43, %cst_30 {dimension_numbers = #tpu.dot_dimension_numbers<[1], [0], [0], [1], [0, 0, 1, 1], [], []>} : vector<32x32xbf16>, vector<32x16xbf16>, vector<32x16xf32> -> vector<32x16xf32>
    %c0_31 = arith.constant 0 : index
    %c0_32 = arith.constant 0 : index
    %45 = vector.load %arg13[%c0_31, %c0_32] : memref<1x16xf32, #tpu.memory_space<vmem>>, vector<1x16xf32>
    %46 = vector.broadcast %45 : vector<1x16xf32> to vector<32x16xf32>
    %47 = arith.addf %44, %46 : vector<32x16xf32>
    %48 = arith.truncf %47 : vector<32x16xf32> to vector<32x16xbf16>
    %c0_33 = arith.constant 0 : index
    %c0_34 = arith.constant 0 : index
    %49 = vector.load %arg14[%c0_33, %c0_34] : memref<16x32xbf16, #tpu.memory_space<vmem>>, vector<16x32xbf16>
    %cst_35 = arith.constant dense<0.000000e+00> : vector<32x32xf32>
    %50 = tpu.matmul %48, %49, %cst_35 {dimension_numbers = #tpu.dot_dimension_numbers<[1], [0], [0], [1], [0, 0, 1, 1], [], []>} : vector<32x16xbf16>, vector<16x32xbf16>, vector<32x32xf32> -> vector<32x32xf32>
    %c0_36 = arith.constant 0 : index
    %c0_37 = arith.constant 0 : index
    %51 = vector.load %arg15[%c0_36, %c0_37] : memref<1x32xf32, #tpu.memory_space<vmem>>, vector<1x32xf32>
    %52 = vector.broadcast %51 : vector<1x32xf32> to vector<32x32xf32>
    %53 = arith.addf %50, %52 : vector<32x32xf32>
    %54 = math.tanh %53 : vector<32x32xf32>
    %c0_38 = arith.constant 0 : index
    %c0_39 = arith.constant 0 : index
    %55 = vector.load %arg16[%c0_38, %c0_39] : memref<16x32xbf16, #tpu.memory_space<vmem>>, vector<16x32xbf16>
    %cst_40 = arith.constant dense<0.000000e+00> : vector<32x32xf32>
    %56 = tpu.matmul %48, %55, %cst_40 {dimension_numbers = #tpu.dot_dimension_numbers<[1], [0], [0], [1], [0, 0, 1, 1], [], []>} : vector<32x16xbf16>, vector<16x32xbf16>, vector<32x32xf32> -> vector<32x32xf32>
    %c0_41 = arith.constant 0 : index
    %c0_42 = arith.constant 0 : index
    %57 = vector.load %arg17[%c0_41, %c0_42] : memref<1x32xf32, #tpu.memory_space<vmem>>, vector<1x32xf32>
    %58 = vector.broadcast %57 : vector<1x32xf32> to vector<32x32xf32>
    %59 = arith.addf %56, %58 : vector<32x32xf32>
    %60 = arith.negf %59 : vector<32x32xf32>
    %61 = math.exp %60 : vector<32x32xf32>
    %cst_43 = arith.constant 1.000000e+00 : f32
    %62 = vector.broadcast %cst_43 : f32 to vector<32x32xf32>
    %63 = arith.addf %62, %61 : vector<32x32xf32>
    %64 = arith.divf %62, %63 : vector<32x32xf32>
    %65 = arith.mulf %54, %64 : vector<32x32xf32>
    %c0_44 = arith.constant 0 : index
    %c0_45 = arith.constant 0 : index
    %66 = vector.load %arg18[%c0_44, %c0_45] : memref<1x32xf32, #tpu.memory_space<vmem>>, vector<1x32xf32>
    %67 = vector.broadcast %66 : vector<1x32xf32> to vector<32x32xf32>
    %68 = arith.mulf %65, %67 : vector<32x32xf32>
    %cst_46 = arith.constant dense<0.000000e+00> : vector<32xf32>
    %69 = vector.multi_reduction <add>, %68, %cst_46 [1] : vector<32x32xf32> to vector<32xf32>
    %70 = vector.shape_cast %69 : vector<32xf32> to vector<32x1xf32>
    %c0_47 = arith.constant 0 : index
    %c0_48 = arith.constant 0 : index
    %71 = vector.load %arg19[%c0_47, %c0_48] : memref<1x1xf32, #tpu.memory_space<vmem>>, vector<1x1xf32>
    %72 = vector.broadcast %71 : vector<1x1xf32> to vector<32x1xf32>
    %73 = arith.addf %70, %72 : vector<32x1xf32>
    %74 = vector.extract_strided_slice %73 {offsets = [0, 0], sizes = [16, 1], strides = [1, 1]} : vector<32x1xf32> to vector<16x1xf32>
    %cst_49 = arith.constant 0.000000e+00 : f32
    %75 = vector.broadcast %cst_49 : f32 to vector<16x1xf32>
    %76 = arith.cmpf ogt, %4, %75 : vector<16x1xf32>
    %cst_50 = arith.constant -1.000000e+30 : f32
    %77 = vector.broadcast %cst_50 : f32 to vector<16x1xf32>
    %78 = arith.select %76, %74, %77 : vector<16x1xi1>, vector<16x1xf32>
    %cst_51 = arith.constant dense<0xFF800000> : vector<1xf32>
    %79 = vector.multi_reduction <maximumf>, %78, %cst_51 [0] : vector<16x1xf32> to vector<1xf32>
    %80 = vector.shape_cast %79 : vector<1xf32> to vector<1x1xf32>
    %81 = vector.broadcast %80 : vector<1x1xf32> to vector<16x1xf32>
    %82 = arith.subf %78, %81 : vector<16x1xf32>
    %83 = math.exp %82 : vector<16x1xf32>
    %84 = arith.mulf %83, %4 : vector<16x1xf32>
    %cst_52 = arith.constant dense<0.000000e+00> : vector<1xf32>
    %85 = vector.multi_reduction <add>, %84, %cst_52 [0] : vector<16x1xf32> to vector<1xf32>
    %86 = vector.shape_cast %85 : vector<1xf32> to vector<1x1xf32>
    %87 = vector.broadcast %86 : vector<1x1xf32> to vector<16x1xf32>
    %88 = arith.divf %84, %87 : vector<16x1xf32>
    %89 = vector.extract_strided_slice %42 {offsets = [0, 0], sizes = [16, 16], strides = [1, 1]} : vector<32x16xf32> to vector<16x16xf32>
    %90 = vector.broadcast %88 : vector<16x1xf32> to vector<16x16xf32>
    %91 = arith.mulf %90, %89 : vector<16x16xf32>
    %cst_53 = arith.constant dense<0.000000e+00> : vector<16xf32>
    %92 = vector.multi_reduction <add>, %91, %cst_53 [0] : vector<16x16xf32> to vector<16xf32>
    %93 = vector.shape_cast %92 : vector<16xf32> to vector<1x16xf32>
    %94 = vector.extract_strided_slice %73 {offsets = [16, 0], sizes = [16, 1], strides = [1, 1]} : vector<32x1xf32> to vector<16x1xf32>
    %cst_54 = arith.constant 0.000000e+00 : f32
    %95 = vector.broadcast %cst_54 : f32 to vector<16x1xf32>
    %96 = arith.cmpf ogt, %4, %95 : vector<16x1xf32>
    %cst_55 = arith.constant -1.000000e+30 : f32
    %97 = vector.broadcast %cst_55 : f32 to vector<16x1xf32>
    %98 = arith.select %96, %94, %97 : vector<16x1xi1>, vector<16x1xf32>
    %cst_56 = arith.constant dense<0xFF800000> : vector<1xf32>
    %99 = vector.multi_reduction <maximumf>, %98, %cst_56 [0] : vector<16x1xf32> to vector<1xf32>
    %100 = vector.shape_cast %99 : vector<1xf32> to vector<1x1xf32>
    %101 = vector.broadcast %100 : vector<1x1xf32> to vector<16x1xf32>
    %102 = arith.subf %98, %101 : vector<16x1xf32>
    %103 = math.exp %102 : vector<16x1xf32>
    %104 = arith.mulf %103, %4 : vector<16x1xf32>
    %cst_57 = arith.constant dense<0.000000e+00> : vector<1xf32>
    %105 = vector.multi_reduction <add>, %104, %cst_57 [0] : vector<16x1xf32> to vector<1xf32>
    %106 = vector.shape_cast %105 : vector<1xf32> to vector<1x1xf32>
    %107 = vector.broadcast %106 : vector<1x1xf32> to vector<16x1xf32>
    %108 = arith.divf %104, %107 : vector<16x1xf32>
    %109 = vector.extract_strided_slice %42 {offsets = [16, 0], sizes = [16, 16], strides = [1, 1]} : vector<32x16xf32> to vector<16x16xf32>
    %110 = vector.broadcast %108 : vector<16x1xf32> to vector<16x16xf32>
    %111 = arith.mulf %110, %109 : vector<16x16xf32>
    %cst_58 = arith.constant dense<0.000000e+00> : vector<16xf32>
    %112 = vector.multi_reduction <add>, %111, %cst_58 [0] : vector<16x16xf32> to vector<16xf32>
    %113 = vector.shape_cast %112 : vector<16xf32> to vector<1x16xf32>
    %114 = tpu.concatenate %93, %113 in 0 : vector<1x16xf32>, vector<1x16xf32> -> vector<2x16xf32>
    %115 = arith.truncf %114 : vector<2x16xf32> to vector<2x16xbf16>
    %c0_59 = arith.constant 0 : index
    %c0_60 = arith.constant 0 : index
    %116 = vector.load %arg20[%c0_59, %c0_60] : memref<16x8xbf16, #tpu.memory_space<vmem>>, vector<16x8xbf16>
    %cst_61 = arith.constant dense<0.000000e+00> : vector<2x8xf32>
    %117 = tpu.matmul %115, %116, %cst_61 {dimension_numbers = #tpu.dot_dimension_numbers<[1], [0], [0], [1], [0, 0, 1, 1], [], []>} : vector<2x16xbf16>, vector<16x8xbf16>, vector<2x8xf32> -> vector<2x8xf32>
    %c0_62 = arith.constant 0 : index
    %c0_63 = arith.constant 0 : index
    %118 = vector.load %arg21[%c0_62, %c0_63] : memref<1x8xf32, #tpu.memory_space<vmem>>, vector<1x8xf32>
    %119 = vector.broadcast %118 : vector<1x8xf32> to vector<2x8xf32>
    %120 = arith.addf %117, %119 : vector<2x8xf32>
    %cst_64 = arith.constant 0.000000e+00 : f32
    %121 = vector.broadcast %cst_64 : f32 to vector<2x8xf32>
    %122 = arith.maximumf %120, %121 : vector<2x8xf32>
    %c0_65 = arith.constant 0 : index
    %c0_66 = arith.constant 0 : index
    %123 = vector.load %arg22[%c0_65, %c0_66] : memref<1x8xf32, #tpu.memory_space<vmem>>, vector<1x8xf32>
    %124 = vector.broadcast %123 : vector<1x8xf32> to vector<2x8xf32>
    %125 = arith.mulf %122, %124 : vector<2x8xf32>
    %cst_67 = arith.constant dense<0.000000e+00> : vector<2xf32>
    %126 = vector.multi_reduction <add>, %125, %cst_67 [1] : vector<2x8xf32> to vector<2xf32>
    %127 = vector.shape_cast %126 : vector<2xf32> to vector<2x1xf32>
    %c0_68 = arith.constant 0 : index
    %c0_69 = arith.constant 0 : index
    %128 = vector.load %arg23[%c0_68, %c0_69] : memref<1x1xf32, #tpu.memory_space<vmem>>, vector<1x1xf32>
    %129 = vector.broadcast %128 : vector<1x1xf32> to vector<2x1xf32>
    %130 = arith.addf %127, %129 : vector<2x1xf32>
    %131 = arith.negf %130 : vector<2x1xf32>
    %132 = math.exp %131 : vector<2x1xf32>
    %cst_70 = arith.constant 1.000000e+00 : f32
    %133 = vector.broadcast %cst_70 : f32 to vector<2x1xf32>
    %134 = arith.addf %133, %132 : vector<2x1xf32>
    %135 = arith.divf %133, %134 : vector<2x1xf32>
    %c0_71 = arith.constant 0 : index
    %c0_72 = arith.constant 0 : index
    %c0_73 = arith.constant 0 : index
    %136 = vector.load %arg24[%c0_71, %c0_72, %c0_73] : memref<1x2x1xf32, #tpu.memory_space<vmem>>, vector<1x2x1xf32>
    %137 = vector.shape_cast %136 : vector<1x2x1xf32> to vector<2x1xf32>
    %138 = vector.shape_cast %135 : vector<2x1xf32> to vector<1x2x1xf32>
    tpu.vector_store %arg24[%c0_71, %c0_72, %c0_73], %138 {strides = array<i32>} : memref<1x2x1xf32, #tpu.memory_space<vmem>>, vector<1x2x1xf32>,
    %139 = tpu.concatenate %42, %31, %36 in 1 : vector<32x16xf32>, vector<32x16xf32>, vector<32x16xf32> -> vector<32x48xf32>
    %c0_74 = arith.constant 0 : index
    %c0_75 = arith.constant 0 : index
    %140 = vector.load %arg25[%c0_74, %c0_75] : memref<32x48xf32, #tpu.memory_space<vmem>>, vector<32x48xf32>
    tpu.vector_store %arg25[%c0_74, %c0_75], %139 {strides = array<i32>} : memref<32x48xf32, #tpu.memory_space<vmem>>, vector<32x48xf32>,
    return
  }
  func.func @transform_0(%arg0: i32) -> (i32, i32, i32) {
    %c0_i32 = arith.constant 0 : i32
    %c0_i32_0 = arith.constant 0 : i32
    %c0_i32_1 = arith.constant 0 : i32
    return %arg0, %c0_i32, %c0_i32_0 : i32, i32, i32
  }
  func.func @transform_1(%arg0: i32) -> (i32, i32) {
    %c0_i32 = arith.constant 0 : i32
    %c0_i32_0 = arith.constant 0 : i32
    %c0_i32_1 = arith.constant 0 : i32
    return %c0_i32, %c0_i32_0 : i32, i32
  }
  func.func @transform_2(%arg0: i32) -> (i32, i32) {
    %c0_i32 = arith.constant 0 : i32
    %c0_i32_0 = arith.constant 0 : i32
    %c0_i32_1 = arith.constant 0 : i32
    return %c0_i32, %c0_i32_0 : i32, i32
  }
  func.func @transform_3(%arg0: i32) -> (i32, i32) {
    %c0_i32 = arith.constant 0 : i32
    %c0_i32_0 = arith.constant 0 : i32
    %c0_i32_1 = arith.constant 0 : i32
    return %c0_i32, %c0_i32_0 : i32, i32
  }
  func.func @transform_4(%arg0: i32) -> (i32, i32) {
    %c0_i32 = arith.constant 0 : i32
    %c0_i32_0 = arith.constant 0 : i32
    %c0_i32_1 = arith.constant 0 : i32
    return %c0_i32, %c0_i32_0 : i32, i32
  }
  func.func @transform_5(%arg0: i32) -> (i32, i32) {
    %c0_i32 = arith.constant 0 : i32
    %c0_i32_0 = arith.constant 0 : i32
    %c0_i32_1 = arith.constant 0 : i32
    return %c0_i32, %c0_i32_0 : i32, i32
  }
  func.func @transform_6(%arg0: i32) -> (i32, i32) {
    %c0_i32 = arith.constant 0 : i32
    %c0_i32_0 = arith.constant 0 : i32
    %c0_i32_1 = arith.constant 0 : i32
    return %c0_i32, %c0_i32_0 : i32, i32
  }
  func.func @transform_7(%arg0: i32) -> (i32, i32) {
    %c0_i32 = arith.constant 0 : i32
    %c0_i32_0 = arith.constant 0 : i32
    %c0_i32_1 = arith.constant 0 : i32
    return %c0_i32, %c0_i32_0 : i32, i32
  }
  func.func @transform_8(%arg0: i32) -> (i32, i32) {
    %c0_i32 = arith.constant 0 : i32
    %c0_i32_0 = arith.constant 0 : i32
    %c0_i32_1 = arith.constant 0 : i32
    return %c0_i32, %c0_i32_0 : i32, i32
  }
  func.func @transform_9(%arg0: i32) -> (i32, i32) {
    %c0_i32 = arith.constant 0 : i32
    %c0_i32_0 = arith.constant 0 : i32
    %c0_i32_1 = arith.constant 0 : i32
    return %c0_i32, %c0_i32_0 : i32, i32
  }
  func.func @transform_10(%arg0: i32) -> (i32, i32) {
    %c0_i32 = arith.constant 0 : i32
    %c0_i32_0 = arith.constant 0 : i32
    %c0_i32_1 = arith.constant 0 : i32
    return %c0_i32, %c0_i32_0 : i32, i32
  }
  func.func @transform_11(%arg0: i32) -> (i32, i32) {
    %c0_i32 = arith.constant 0 : i32
    %c0_i32_0 = arith.constant 0 : i32
    %c0_i32_1 = arith.constant 0 : i32
    return %c0_i32, %c0_i32_0 : i32, i32
  }
  func.func @transform_12(%arg0: i32) -> (i32, i32) {
    %c0_i32 = arith.constant 0 : i32
    %c0_i32_0 = arith.constant 0 : i32
    %c0_i32_1 = arith.constant 0 : i32
    return %c0_i32, %c0_i32_0 : i32, i32
  }
  func.func @transform_13(%arg0: i32) -> (i32, i32) {
    %c0_i32 = arith.constant 0 : i32
    %c0_i32_0 = arith.constant 0 : i32
    %c0_i32_1 = arith.constant 0 : i32
    return %c0_i32, %c0_i32_0 : i32, i32
  }
  func.func @transform_14(%arg0: i32) -> (i32, i32) {
    %c0_i32 = arith.constant 0 : i32
    %c0_i32_0 = arith.constant 0 : i32
    %c0_i32_1 = arith.constant 0 : i32
    return %c0_i32, %c0_i32_0 : i32, i32
  }
  func.func @transform_15(%arg0: i32) -> (i32, i32) {
    %c0_i32 = arith.constant 0 : i32
    %c0_i32_0 = arith.constant 0 : i32
    %c0_i32_1 = arith.constant 0 : i32
    return %c0_i32, %c0_i32_0 : i32, i32
  }
  func.func @transform_16(%arg0: i32) -> (i32, i32) {
    %c0_i32 = arith.constant 0 : i32
    %c0_i32_0 = arith.constant 0 : i32
    %c0_i32_1 = arith.constant 0 : i32
    return %c0_i32, %c0_i32_0 : i32, i32
  }
  func.func @transform_17(%arg0: i32) -> (i32, i32) {
    %c0_i32 = arith.constant 0 : i32
    %c0_i32_0 = arith.constant 0 : i32
    %c0_i32_1 = arith.constant 0 : i32
    return %c0_i32, %c0_i32_0 : i32, i32
  }
  func.func @transform_18(%arg0: i32) -> (i32, i32) {
    %c0_i32 = arith.constant 0 : i32
    %c0_i32_0 = arith.constant 0 : i32
    %c0_i32_1 = arith.constant 0 : i32
    return %c0_i32, %c0_i32_0 : i32, i32
  }
  func.func @transform_19(%arg0: i32) -> (i32, i32) {
    %c0_i32 = arith.constant 0 : i32
    %c0_i32_0 = arith.constant 0 : i32
    %c0_i32_1 = arith.constant 0 : i32
    return %c0_i32, %c0_i32_0 : i32, i32
  }
  func.func @transform_20(%arg0: i32) -> (i32, i32) {
    %c0_i32 = arith.constant 0 : i32
    %c0_i32_0 = arith.constant 0 : i32
    %c0_i32_1 = arith.constant 0 : i32
    return %c0_i32, %c0_i32_0 : i32, i32
  }
  func.func @transform_21(%arg0: i32) -> (i32, i32) {
    %c0_i32 = arith.constant 0 : i32
    %c0_i32_0 = arith.constant 0 : i32
    %c0_i32_1 = arith.constant 0 : i32
    return %c0_i32, %c0_i32_0 : i32, i32
  }
  func.func @transform_22(%arg0: i32) -> (i32, i32) {
    %c0_i32 = arith.constant 0 : i32
    %c0_i32_0 = arith.constant 0 : i32
    %c0_i32_1 = arith.constant 0 : i32
    return %c0_i32, %c0_i32_0 : i32, i32
  }
  func.func @transform_23(%arg0: i32) -> (i32, i32, i32) {
    %c0_i32 = arith.constant 0 : i32
    %c0_i32_0 = arith.constant 0 : i32
    %c0_i32_1 = arith.constant 0 : i32
    return %arg0, %c0_i32, %c0_i32_0 : i32, i32, i32
  }
  func.func @transform_24(%arg0: i32) -> (i32, i32) {
    %c0_i32 = arith.constant 0 : i32
    %c0_i32_0 = arith.constant 0 : i32
    return %arg0, %c0_i32 : i32, i32
  }
}

</mosaic_0001>

<llo_original>
// kernel: tpu_custom_call.1
$region0: #{tpu_custom_call.1}
  #allocation0 [shape = 'u32[]', space=smem, size = 0x4, offset = 0x4, fixed_abs, tag = 'smem constant byte address 0x4 - core index']
  #allocation1 [shape = 'u32[144,128]{1,0:T(1,128)}', space=vmem, size = 0x12000, scoped, tag = 'internal scratch']
  #allocation2 [shape = 'f32[1,1]{1,0:T(1,128)S(1)}', space=vmem, size = 0x200, scoped, tag = 'scoped memory for tpu_custom_call.1']
  #allocation3 [shape = 'f32[1,1]{1,0:T(1,128)S(1)}', space=vmem, size = 0x200, scoped, tag = 'scoped memory for tpu_custom_call.1']
  %s0 = inlined_call_operand.hbm [shape: f32[6,16,32], index: 0, kind: input, shape index: {}]
  %s1 = inlined_call_operand.hbm [shape: f32[16,16], index: 1, kind: input, shape index: {}]
  %s2 = inlined_call_operand.hbm [shape: f32[16,1], index: 2, kind: input, shape index: {}]
  %s3 = inlined_call_operand.hbm [shape: bf16[32,64], index: 3, kind: input, shape index: {}]
  %s4 = inlined_call_operand.hbm [shape: f32[1,64], index: 4, kind: input, shape index: {}]
  %s5 = inlined_call_operand.hbm [shape: bf16[64,32], index: 5, kind: input, shape index: {}]
  %s6 = inlined_call_operand.hbm [shape: f32[1,32], index: 6, kind: input, shape index: {}]
  %s7 = inlined_call_operand.hbm [shape: bf16[32,16], index: 7, kind: input, shape index: {}]
  %s8 = inlined_call_operand.hbm [shape: f32[1,16], index: 8, kind: input, shape index: {}]
  %s9 = inlined_call_operand.hbm [shape: bf16[32,16], index: 9, kind: input, shape index: {}]
  %s10 = inlined_call_operand.hbm [shape: f32[1,16], index: 10, kind: input, shape index: {}]
  %s11 = inlined_call_operand.hbm [shape: bf16[32,16], index: 11, kind: input, shape index: {}]
  %s12 = inlined_call_operand.hbm [shape: f32[1,16], index: 12, kind: input, shape index: {}]
  %s13 = inlined_call_operand.hbm [shape: bf16[16,32], index: 13, kind: input, shape index: {}]
  %s14 = inlined_call_operand.hbm [shape: f32[1,32], index: 14, kind: input, shape index: {}]
  %s15 = inlined_call_operand.hbm [shape: bf16[16,32], index: 15, kind: input, shape index: {}]
  %s16 = inlined_call_operand.hbm [shape: f32[1,32], index: 16, kind: input, shape index: {}]
  %s17 = inlined_call_operand.hbm [shape: f32[1,32], index: 17, kind: input, shape index: {}]
  %s18 = inlined_call_operand.<no memory space> [shape: f32[1,1], index: 18, kind: input, shape index: {}]
  %s19 = inlined_call_operand.hbm [shape: bf16[16,8], index: 19, kind: input, shape index: {}]
  %s20 = inlined_call_operand.hbm [shape: f32[1,8], index: 20, kind: input, shape index: {}]
  %s21 = inlined_call_operand.hbm [shape: f32[1,8], index: 21, kind: input, shape index: {}]
  %s22 = inlined_call_operand.<no memory space> [shape: f32[1,1], index: 22, kind: input, shape index: {}]
  %s23 = inlined_call_operand.hbm [shape: f32[3,2,1], index: 23, kind: output, shape index: {0}]
  %s24 = inlined_call_operand.hbm [shape: f32[96,48], index: 24, kind: output, shape index: {1}]
  %25 = xla_tuple %s23, %s24
  %s26 = sld [smem:[#allocation0]]
  $region217: #{tpu_custom_call.1} parent=0
    _
  %s28 = ssub.s32 1, %s26
  %s29 = scalar_select 0, %s28, %s26
  %v30 = vstv %s18
  %31 = vst [vmem:[#allocation2] sm:$0x1] %v30
  %v32 = vstv %s22
  %33 = vst [vmem:[#allocation3] sm:$0x1] %v32
  $region1: #{tpu_custom_call.1} parent=0
    #allocation4 [shape = 'u8[32768]{0}', space=vmem, size = 0x8000, scoped, tag = 'input window, operand 0']
    #allocation5 [shape = 's32[2]{0}', space=sflag, size = 0x8, scoped, tag = 'scoped memory for tpu_custom_call.1']
    #allocation6 [shape = 's32[2]{0}', space=sflag, size = 0x8, scoped, tag = 'scoped memory for tpu_custom_call.1']
    #allocation7 [shape = 'u8[8192]{0}', space=vmem, size = 0x2000, scoped, tag = 'input window, operand 1, single buffered']
    #allocation8 [shape = 's32[1]{0}', space=sflag, size = 0x4, scoped, tag = 'scoped memory for tpu_custom_call.1']
    #allocation9 [shape = 'u8[8192]{0}', space=vmem, size = 0x2000, scoped, tag = 'input window, operand 2, single buffered']
    #allocation10 [shape = 'u8[8192]{0}', space=vmem, size = 0x2000, scoped, tag = 'input window, operand 3, single buffered']
    #allocation11 [shape = 's32[1]{0}', space=sflag, size = 0x4, scoped, tag = 'scoped memory for tpu_custom_call.1']
    #allocation12 [shape = 'u8[512]{0}', space=vmem, size = 0x400, scoped, tag = 'input window, operand 4, single buffered']
    #allocation13 [shape = 'u8[16384]{0}', space=vmem, size = 0x4000, scoped, tag = 'input window, operand 5, single buffered']
    #allocation14 [shape = 's32[1]{0}', space=sflag, size = 0x4, scoped, tag = 'scoped memory for tpu_custom_call.1']
    #allocation15 [shape = 'u8[512]{0}', space=vmem, size = 0x400, scoped, tag = 'input window, operand 6, single buffered']
    #allocation16 [shape = 'u8[8192]{0}', space=vmem, size = 0x2000, scoped, tag = 'input window, operand 7, single buffered']
    #allocation17 [shape = 's32[1]{0}', space=sflag, size = 0x4, scoped, tag = 'scoped memory for tpu_custom_call.1']
    #allocation18 [shape = 'u8[512]{0}', space=vmem, size = 0x400, scoped, tag = 'input window, operand 8, single buffered']
    #allocation19 [shape = 'u8[8192]{0}', space=vmem, size = 0x2000, scoped, tag = 'input window, operand 9, single buffered']
    #allocation20 [shape = 's32[1]{0}', space=sflag, size = 0x4, scoped, tag = 'scoped memory for tpu_custom_call.1']
    #allocation21 [shape = 'u8[512]{0}', space=vmem, size = 0x400, scoped, tag = 'input window, operand 10, single buffered']
    #allocation22 [shape = 'u8[8192]{0}', space=vmem, size = 0x2000, scoped, tag = 'input window, operand 11, single buffered']
    #allocation23 [shape = 's32[1]{0}', space=sflag, size = 0x4, scoped, tag = 'scoped memory for tpu_custom_call.1']
    #allocation24 [shape = 'u8[512]{0}', space=vmem, size = 0x400, scoped, tag = 'input window, operand 12, single buffered']
    #allocation25 [shape = 'u8[4096]{0}', space=vmem, size = 0x1000, scoped, tag = 'input window, operand 13, single buffered']
    #allocation26 [shape = 's32[1]{0}', space=sflag, size = 0x4, scoped, tag = 'scoped memory for tpu_custom_call.1']
    #allocation27 [shape = 'u8[512]{0}', space=vmem, size = 0x400, scoped, tag = 'input window, operand 14, single buffered']
    #allocation28 [shape = 'u8[4096]{0}', space=vmem, size = 0x1000, scoped, tag = 'input window, operand 15, single buffered']
    #allocation29 [shape = 's32[1]{0}', space=sflag, size = 0x4, scoped, tag = 'scoped memory for tpu_custom_call.1']
    #allocation30 [shape = 'u8[512]{0}', space=vmem, size = 0x400, scoped, tag = 'input window, operand 16, single buffered']
    #allocation31 [shape = 'u8[512]{0}', space=vmem, size = 0x400, scoped, tag = 'input window, operand 17, single buffered']
    #allocation32 [shape = 's32[1]{0}', space=sflag, size = 0x4, scoped, tag = 'scoped memory for tpu_custom_call.1']
    #allocation33 [shape = 'u8[4096]{0}', space=vmem, size = 0x1000, scoped, tag = 'input window, operand 19, single buffered']
    #allocation34 [shape = 'u8[512]{0}', space=vmem, size = 0x400, scoped, tag = 'input window, operand 20, single buffered']
    #allocation35 [shape = 's32[1]{0}', space=sflag, size = 0x4, scoped, tag = 'scoped memory for tpu_custom_call.1']
    #allocation36 [shape = 'u8[512]{0}', space=vmem, size = 0x400, scoped, tag = 'input window, operand 21, single buffered']
    #allocation37 [shape = 'u8[2048]{0}', space=vmem, size = 0x800, scoped, tag = 'output window, operand 0']
    #allocation38 [shape = 'u8[32768]{0}', space=vmem, size = 0x8000, scoped, tag = 'output window, operand 1']
    #allocation39 [shape = 's32[2]{0}', space=sflag, size = 0x8, scoped, tag = 'scoped memory for tpu_custom_call.1']
    %34 = vsyncpa [#allocation5], 0
    %s35 = scalar_lea.sflag [#allocation5], 1
    %36 = vsyncpa %s35, 0
    %37 = vsyncpa [#allocation8], 0
    %38 = vsyncpa [#allocation11], 0
    %39 = vsyncpa [#allocation14], 0
    %40 = vsyncpa [#allocation17], 0
    %41 = vsyncpa [#allocation20], 0
    %42 = vsyncpa [#allocation23], 0
    %43 = vsyncpa [#allocation26], 0
    %44 = vsyncpa [#allocation29], 0
    %45 = vsyncpa [#allocation32], 0
    %46 = vsyncpa [#allocation35], 0
    %47 = vsyncpa [#allocation6], 0
    %s48 = scalar_lea.sflag [#allocation6], 1
    %49 = vsyncpa %s48, 0
    %50 = vsyncpa [#allocation39], 0
    %s51 = scalar_lea.sflag [#allocation39], 1
    %52 = vsyncpa %s51, 0
    loop: start=0, step=1, limit=5
    $region2: #{tpu_custom_call.1} parent=1 // loop_pre_header
      _
    $region3: #{tpu_custom_call.1} parent=1 // loop_header
      %s54 = sphi 0, %s58
      %p55 = scmp.ge.s32.totalorder %s54, 5
      %s64 = sphi 0, %s66
      %s67 = sphi 0, %s64
      %s68 = sphi 0, %s67
      %s84 = sphi 0, %s68
      %s88 = sphi 0, %s88
      %s90 = sphi 0, %s88
      %s91 = sphi 0, %s90
      %s105 = sphi 0, %s91
      %s109 = sphi 0, %s109
      %s111 = sphi 0, %s109
      %s112 = sphi 0, %s111
      %s126 = sphi 0, %s112
      %s130 = sphi 0, %s130
      %s132 = sphi 0, %s130
      %s133 = sphi 0, %s132
      %s147 = sphi 0, %s133
      %s151 = sphi 0, %s151
      %s153 = sphi 0, %s151
      %s154 = sphi 0, %s153
      %s168 = sphi 0, %s154
      %s172 = sphi 0, %s172
      %s174 = sphi 0, %s172
      %s175 = sphi 0, %s174
      %s189 = sphi 0, %s175
      %s193 = sphi 0, %s193
      %s195 = sphi 0, %s193
      %s196 = sphi 0, %s195
      %s210 = sphi 0, %s196
      %s214 = sphi 0, %s214
      %s216 = sphi 0, %s214
      %s217 = sphi 0, %s216
      %s231 = sphi 0, %s217
      %s235 = sphi 0, %s235
      %s237 = sphi 0, %s235
      %s238 = sphi 0, %s237
      %s252 = sphi 0, %s238
      %s256 = sphi 0, %s256
      %s258 = sphi 0, %s256
      %s259 = sphi 0, %s258
      %s273 = sphi 0, %s259
      %s277 = sphi 0, %s277
      %s279 = sphi 0, %s277
      %s280 = sphi 0, %s279
      %s294 = sphi 0, %s280
      %s298 = sphi 0, %s298
      %s300 = sphi 0, %s298
      %s301 = sphi 0, %s300
      %s315 = sphi 0, %s301
      %s319 = sphi 0, %s319
      %s321 = sphi 0, %s319
      %s322 = sphi 0, %s321
      %s336 = sphi 0, %s322
      %s340 = sphi 0, %s340
      %s342 = sphi 0, %s340
      %s343 = sphi 0, %s342
      %s357 = sphi 0, %s343
      %s361 = sphi 0, %s361
      %s363 = sphi 0, %s361
      %s364 = sphi 0, %s363
      %s378 = sphi 0, %s364
      %s382 = sphi 0, %s382
      %s384 = sphi 0, %s382
      %s385 = sphi 0, %s384
      %s399 = sphi 0, %s385
      %s403 = sphi 0, %s403
      %s405 = sphi 0, %s403
      %s406 = sphi 0, %s405
      %s420 = sphi 0, %s406
      %s424 = sphi 0, %s424
      %s426 = sphi 0, %s424
      %s427 = sphi 0, %s426
      %s441 = sphi 0, %s427
      %s445 = sphi 0, %s445
      %s447 = sphi 0, %s445
      %s448 = sphi 0, %s447
      %s462 = sphi 0, %s448
      %s466 = sphi 0, %s466
      %s468 = sphi 0, %s466
      %s469 = sphi 0, %s468
      %s483 = sphi 0, %s469
      %s487 = sphi 0, %s487
      %s489 = sphi 0, %s487
      %s490 = sphi 0, %s489
      %s504 = sphi 0, %s490
      %s508 = sphi 0, %s508
      %s510 = sphi 0, %s508
      %s511 = sphi 0, %s510
      %s525 = sphi 0, %s511
      %s529 = sphi 0, %s529
      %s531 = sphi 0, %s529
      %s532 = sphi 0, %s531
      %s546 = sphi 0, %s532
      %s552 = sphi 0, %s554
      %s555 = sphi 0, %s552
      %s556 = sphi 0, %s555
      %s572 = sphi 0, %s556
      %s578 = sphi 0, %s580
      %s581 = sphi 0, %s578
      %s582 = sphi 0, %s581
      %s598 = sphi 0, %s582
    $region4: #{tpu_custom_call.1} parent=1 // loop_header_branch
      %57 = sbr.rel (%p55) target = $region8
    $region5: #{tpu_custom_call.1} parent=1 // loop_body
      %s59 = ssub.s32 %s54, 1
      %s60 = ssub.s32 %s54, 2
      %s61 = sadd.s32 %s54, 1
      %s62 = ssub.s32 %s54, %s61
      %p63 = scmp.eq.s32.totalorder %s62, 0
      %s65 = sadd.s32 %s64, 1
      %s66 = scalar_select %p63, %s64, %s65
      %p69 = pneg %p63
      %p70 = scmp.eq.s32.totalorder %s54, 2
      %p71 = por %p69, %p70
      %p72 = scmp.ne.s32.totalorder %s64, %s67
      %p73 = scmp.eq.s32.totalorder %s54, 0
      %p74 = por %p72, %p73
      %p75 = scmp.ne.s32.totalorder %s64, %s67
      %p76 = scmp.eq.s32.totalorder %s59, 2
      %p77 = por %p75, %p76
      %p78 = scmp.ne.s32.totalorder %s67, %s68
      %p79 = scmp.eq.s32.totalorder %s59, 0
      %p80 = por %p78, %p79
      %p81 = scmp.ne.s32.totalorder %s67, %s68
      %p82 = scmp.eq.s32.totalorder %s60, 2
      %p83 = por %p81, %p82
      %p85 = scmp.ne.s32.totalorder %s68, %s84
      %p86 = scmp.eq.s32.totalorder %s60, 0
      %p87 = por %p85, %p86
      %s89 = sadd.s32 %s88, 1
      %p92 = scmp.eq.s32.totalorder %s54, 2
      %p93 = scmp.ne.s32.totalorder %s88, %s90
      %p94 = scmp.eq.s32.totalorder %s54, 0
      %p95 = por %p93, %p94
      %p96 = scmp.ne.s32.totalorder %s88, %s90
      %p97 = scmp.eq.s32.totalorder %s59, 2
      %p98 = por %p96, %p97
      %p99 = scmp.ne.s32.totalorder %s90, %s91
      %p100 = scmp.eq.s32.totalorder %s59, 0
      %p101 = por %p99, %p100
      %p102 = scmp.ne.s32.totalorder %s90, %s91
      %p103 = scmp.eq.s32.totalorder %s60, 2
      %p104 = por %p102, %p103
      %p106 = scmp.ne.s32.totalorder %s91, %s105
      %p107 = scmp.eq.s32.totalorder %s60, 0
      %p108 = por %p106, %p107
      %s110 = sadd.s32 %s109, 1
      %p113 = scmp.eq.s32.totalorder %s54, 2
      %p114 = scmp.ne.s32.totalorder %s109, %s111
      %p115 = scmp.eq.s32.totalorder %s54, 0
      %p116 = por %p114, %p115
      %p117 = scmp.ne.s32.totalorder %s109, %s111
      %p118 = scmp.eq.s32.totalorder %s59, 2
      %p119 = por %p117, %p118
      %p120 = scmp.ne.s32.totalorder %s111, %s112
      %p121 = scmp.eq.s32.totalorder %s59, 0
      %p122 = por %p120, %p121
      %p123 = scmp.ne.s32.totalorder %s111, %s112
      %p124 = scmp.eq.s32.totalorder %s60, 2
      %p125 = por %p123, %p124
      %p127 = scmp.ne.s32.totalorder %s112, %s126
      %p128 = scmp.eq.s32.totalorder %s60, 0
      %p129 = por %p127, %p128
      %s131 = sadd.s32 %s130, 1
      %p134 = scmp.eq.s32.totalorder %s54, 2
      %p135 = scmp.ne.s32.totalorder %s130, %s132
      %p136 = scmp.eq.s32.totalorder %s54, 0
      %p137 = por %p135, %p136
      %p138 = scmp.ne.s32.totalorder %s130, %s132
      %p139 = scmp.eq.s32.totalorder %s59, 2
      %p140 = por %p138, %p139
      %p141 = scmp.ne.s32.totalorder %s132, %s133
      %p142 = scmp.eq.s32.totalorder %s59, 0
      %p143 = por %p141, %p142
      %p144 = scmp.ne.s32.totalorder %s132, %s133
      %p145 = scmp.eq.s32.totalorder %s60, 2
      %p146 = por %p144, %p145
      %p148 = scmp.ne.s32.totalorder %s133, %s147
      %p149 = scmp.eq.s32.totalorder %s60, 0
      %p150 = por %p148, %p149
      %s152 = sadd.s32 %s151, 1
      %p155 = scmp.eq.s32.totalorder %s54, 2
      %p156 = scmp.ne.s32.totalorder %s151, %s153
      %p157 = scmp.eq.s32.totalorder %s54, 0
      %p158 = por %p156, %p157
      %p159 = scmp.ne.s32.totalorder %s151, %s153
      %p160 = scmp.eq.s32.totalorder %s59, 2
      %p161 = por %p159, %p160
      %p162 = scmp.ne.s32.totalorder %s153, %s154
      %p163 = scmp.eq.s32.totalorder %s59, 0
      %p164 = por %p162, %p163
      %p165 = scmp.ne.s32.totalorder %s153, %s154
      %p166 = scmp.eq.s32.totalorder %s60, 2
      %p167 = por %p165, %p166
      %p169 = scmp.ne.s32.totalorder %s154, %s168
      %p170 = scmp.eq.s32.totalorder %s60, 0
      %p171 = por %p169, %p170
      %s173 = sadd.s32 %s172, 1
      %p176 = scmp.eq.s32.totalorder %s54, 2
      %p177 = scmp.ne.s32.totalorder %s172, %s174
      %p178 = scmp.eq.s32.totalorder %s54, 0
      %p179 = por %p177, %p178
      %p180 = scmp.ne.s32.totalorder %s172, %s174
      %p181 = scmp.eq.s32.totalorder %s59, 2
      %p182 = por %p180, %p181
      %p183 = scmp.ne.s32.totalorder %s174, %s175
      %p184 = scmp.eq.s32.totalorder %s59, 0
      %p185 = por %p183, %p184
      %p186 = scmp.ne.s32.totalorder %s174, %s175
      %p187 = scmp.eq.s32.totalorder %s60, 2
      %p188 = por %p186, %p187
      %p190 = scmp.ne.s32.totalorder %s175, %s189
      %p191 = scmp.eq.s32.totalorder %s60, 0
      %p192 = por %p190, %p191
      %s194 = sadd.s32 %s193, 1
      %p197 = scmp.eq.s32.totalorder %s54, 2
      %p198 = scmp.ne.s32.totalorder %s193, %s195
      %p199 = scmp.eq.s32.totalorder %s54, 0
      %p200 = por %p198, %p199
      %p201 = scmp.ne.s32.totalorder %s193, %s195
      %p202 = scmp.eq.s32.totalorder %s59, 2
      %p203 = por %p201, %p202
      %p204 = scmp.ne.s32.totalorder %s195, %s196
      %p205 = scmp.eq.s32.totalorder %s59, 0
      %p206 = por %p204, %p205
      %p207 = scmp.ne.s32.totalorder %s195, %s196
      %p208 = scmp.eq.s32.totalorder %s60, 2
      %p209 = por %p207, %p208
      %p211 = scmp.ne.s32.totalorder %s196, %s210
      %p212 = scmp.eq.s32.totalorder %s60, 0
      %p213 = por %p211, %p212
      %s215 = sadd.s32 %s214, 1
      %p218 = scmp.eq.s32.totalorder %s54, 2
      %p219 = scmp.ne.s32.totalorder %s214, %s216
      %p220 = scmp.eq.s32.totalorder %s54, 0
      %p221 = por %p219, %p220
      %p222 = scmp.ne.s32.totalorder %s214, %s216
      %p223 = scmp.eq.s32.totalorder %s59, 2
      %p224 = por %p222, %p223
      %p225 = scmp.ne.s32.totalorder %s216, %s217
      %p226 = scmp.eq.s32.totalorder %s59, 0
      %p227 = por %p225, %p226
      %p228 = scmp.ne.s32.totalorder %s216, %s217
      %p229 = scmp.eq.s32.totalorder %s60, 2
      %p230 = por %p228, %p229
      %p232 = scmp.ne.s32.totalorder %s217, %s231
      %p233 = scmp.eq.s32.totalorder %s60, 0
      %p234 = por %p232, %p233
      %s236 = sadd.s32 %s235, 1
      %p239 = scmp.eq.s32.totalorder %s54, 2
      %p240 = scmp.ne.s32.totalorder %s235, %s237
      %p241 = scmp.eq.s32.totalorder %s54, 0
      %p242 = por %p240, %p241
      %p243 = scmp.ne.s32.totalorder %s235, %s237
      %p244 = scmp.eq.s32.totalorder %s59, 2
      %p245 = por %p243, %p244
      %p246 = scmp.ne.s32.totalorder %s237, %s238
      %p247 = scmp.eq.s32.totalorder %s59, 0
      %p248 = por %p246, %p247
      %p249 = scmp.ne.s32.totalorder %s237, %s238
      %p250 = scmp.eq.s32.totalorder %s60, 2
      %p251 = por %p249, %p250
      %p253 = scmp.ne.s32.totalorder %s238, %s252
      %p254 = scmp.eq.s32.totalorder %s60, 0
      %p255 = por %p253, %p254
      %s257 = sadd.s32 %s256, 1
      %p260 = scmp.eq.s32.totalorder %s54, 2
      %p261 = scmp.ne.s32.totalorder %s256, %s258
      %p262 = scmp.eq.s32.totalorder %s54, 0
      %p263 = por %p261, %p262
      %p264 = scmp.ne.s32.totalorder %s256, %s258
      %p265 = scmp.eq.s32.totalorder %s59, 2
      %p266 = por %p264, %p265
      %p267 = scmp.ne.s32.totalorder %s258, %s259
      %p268 = scmp.eq.s32.totalorder %s59, 0
      %p269 = por %p267, %p268
      %p270 = scmp.ne.s32.totalorder %s258, %s259
      %p271 = scmp.eq.s32.totalorder %s60, 2
      %p272 = por %p270, %p271
      %p274 = scmp.ne.s32.totalorder %s259, %s273
      %p275 = scmp.eq.s32.totalorder %s60, 0
      %p276 = por %p274, %p275
      %s278 = sadd.s32 %s277, 1
      %p281 = scmp.eq.s32.totalorder %s54, 2
      %p282 = scmp.ne.s32.totalorder %s277, %s279
      %p283 = scmp.eq.s32.totalorder %s54, 0
      %p284 = por %p282, %p283
      %p285 = scmp.ne.s32.totalorder %s277, %s279
      %p286 = scmp.eq.s32.totalorder %s59, 2
      %p287 = por %p285, %p286
      %p288 = scmp.ne.s32.totalorder %s279, %s280
      %p289 = scmp.eq.s32.totalorder %s59, 0
      %p290 = por %p288, %p289
      %p291 = scmp.ne.s32.totalorder %s279, %s280
      %p292 = scmp.eq.s32.totalorder %s60, 2
      %p293 = por %p291, %p292
      %p295 = scmp.ne.s32.totalorder %s280, %s294
      %p296 = scmp.eq.s32.totalorder %s60, 0
      %p297 = por %p295, %p296
      %s299 = sadd.s32 %s298, 1
      %p302 = scmp.eq.s32.totalorder %s54, 2
      %p303 = scmp.ne.s32.totalorder %s298, %s300
      %p304 = scmp.eq.s32.totalorder %s54, 0
      %p305 = por %p303, %p304
      %p306 = scmp.ne.s32.totalorder %s298, %s300
      %p307 = scmp.eq.s32.totalorder %s59, 2
      %p308 = por %p306, %p307
      %p309 = scmp.ne.s32.totalorder %s300, %s301
      %p310 = scmp.eq.s32.totalorder %s59, 0
      %p311 = por %p309, %p310
      %p312 = scmp.ne.s32.totalorder %s300, %s301
      %p313 = scmp.eq.s32.totalorder %s60, 2
      %p314 = por %p312, %p313
      %p316 = scmp.ne.s32.totalorder %s301, %s315
      %p317 = scmp.eq.s32.totalorder %s60, 0
      %p318 = por %p316, %p317
      %s320 = sadd.s32 %s319, 1
      %p323 = scmp.eq.s32.totalorder %s54, 2
      %p324 = scmp.ne.s32.totalorder %s319, %s321
      %p325 = scmp.eq.s32.totalorder %s54, 0
      %p326 = por %p324, %p325
      %p327 = scmp.ne.s32.totalorder %s319, %s321
      %p328 = scmp.eq.s32.totalorder %s59, 2
      %p329 = por %p327, %p328
      %p330 = scmp.ne.s32.totalorder %s321, %s322
      %p331 = scmp.eq.s32.totalorder %s59, 0
      %p332 = por %p330, %p331
      %p333 = scmp.ne.s32.totalorder %s321, %s322
      %p334 = scmp.eq.s32.totalorder %s60, 2
      %p335 = por %p333, %p334
      %p337 = scmp.ne.s32.totalorder %s322, %s336
      %p338 = scmp.eq.s32.totalorder %s60, 0
      %p339 = por %p337, %p338
      %s341 = sadd.s32 %s340, 1
      %p344 = scmp.eq.s32.totalorder %s54, 2
      %p345 = scmp.ne.s32.totalorder %s340, %s342
      %p346 = scmp.eq.s32.totalorder %s54, 0
      %p347 = por %p345, %p346
      %p348 = scmp.ne.s32.totalorder %s340, %s342
      %p349 = scmp.eq.s32.totalorder %s59, 2
      %p350 = por %p348, %p349
      %p351 = scmp.ne.s32.totalorder %s342, %s343
      %p352 = scmp.eq.s32.totalorder %s59, 0
      %p353 = por %p351, %p352
      %p354 = scmp.ne.s32.totalorder %s342, %s343
      %p355 = scmp.eq.s32.totalorder %s60, 2
      %p356 = por %p354, %p355
      %p358 = scmp.ne.s32.totalorder %s343, %s357
      %p359 = scmp.eq.s32.totalorder %s60, 0
      %p360 = por %p358, %p359
      %s362 = sadd.s32 %s361, 1
      %p365 = scmp.eq.s32.totalorder %s54, 2
      %p366 = scmp.ne.s32.totalorder %s361, %s363
      %p367 = scmp.eq.s32.totalorder %s54, 0
      %p368 = por %p366, %p367
      %p369 = scmp.ne.s32.totalorder %s361, %s363
      %p370 = scmp.eq.s32.totalorder %s59, 2
      %p371 = por %p369, %p370
      %p372 = scmp.ne.s32.totalorder %s363, %s364
      %p373 = scmp.eq.s32.totalorder %s59, 0
      %p374 = por %p372, %p373
      %p375 = scmp.ne.s32.totalorder %s363, %s364
      %p376 = scmp.eq.s32.totalorder %s60, 2
      %p377 = por %p375, %p376
      %p379 = scmp.ne.s32.totalorder %s364, %s378
      %p380 = scmp.eq.s32.totalorder %s60, 0
      %p381 = por %p379, %p380
      %s383 = sadd.s32 %s382, 1
      %p386 = scmp.eq.s32.totalorder %s54, 2
      %p387 = scmp.ne.s32.totalorder %s382, %s384
      %p388 = scmp.eq.s32.totalorder %s54, 0
      %p389 = por %p387, %p388
      %p390 = scmp.ne.s32.totalorder %s382, %s384
      %p391 = scmp.eq.s32.totalorder %s59, 2
      %p392 = por %p390, %p391
      %p393 = scmp.ne.s32.totalorder %s384, %s385
      %p394 = scmp.eq.s32.totalorder %s59, 0
      %p395 = por %p393, %p394
      %p396 = scmp.ne.s32.totalorder %s384, %s385
      %p397 = scmp.eq.s32.totalorder %s60, 2
      %p398 = por %p396, %p397
      %p400 = scmp.ne.s32.totalorder %s385, %s399
      %p401 = scmp.eq.s32.totalorder %s60, 0
      %p402 = por %p400, %p401
      %s404 = sadd.s32 %s403, 1
      %p407 = scmp.eq.s32.totalorder %s54, 2
      %p408 = scmp.ne.s32.totalorder %s403, %s405
      %p409 = scmp.eq.s32.totalorder %s54, 0
      %p410 = por %p408, %p409
      %p411 = scmp.ne.s32.totalorder %s403, %s405
      %p412 = scmp.eq.s32.totalorder %s59, 2
      %p413 = por %p411, %p412
      %p414 = scmp.ne.s32.totalorder %s405, %s406
      %p415 = scmp.eq.s32.totalorder %s59, 0
      %p416 = por %p414, %p415
      %p417 = scmp.ne.s32.totalorder %s405, %s406
      %p418 = scmp.eq.s32.totalorder %s60, 2
      %p419 = por %p417, %p418
      %p421 = scmp.ne.s32.totalorder %s406, %s420
      %p422 = scmp.eq.s32.totalorder %s60, 0
      %p423 = por %p421, %p422
      %s425 = sadd.s32 %s424, 1
      %p428 = scmp.eq.s32.totalorder %s54, 2
      %p429 = scmp.ne.s32.totalorder %s424, %s426
      %p430 = scmp.eq.s32.totalorder %s54, 0
      %p431 = por %p429, %p430
      %p432 = scmp.ne.s32.totalorder %s424, %s426
      %p433 = scmp.eq.s32.totalorder %s59, 2
      %p434 = por %p432, %p433
      %p435 = scmp.ne.s32.totalorder %s426, %s427
      %p436 = scmp.eq.s32.totalorder %s59, 0
      %p437 = por %p435, %p436
      %p438 = scmp.ne.s32.totalorder %s426, %s427
      %p439 = scmp.eq.s32.totalorder %s60, 2
      %p440 = por %p438, %p439
      %p442 = scmp.ne.s32.totalorder %s427, %s441
      %p443 = scmp.eq.s32.totalorder %s60, 0
      %p444 = por %p442, %p443
      %s446 = sadd.s32 %s445, 1
      %p449 = scmp.eq.s32.totalorder %s54, 2
      %p450 = scmp.ne.s32.totalorder %s445, %s447
      %p451 = scmp.eq.s32.totalorder %s54, 0
      %p452 = por %p450, %p451
      %p453 = scmp.ne.s32.totalorder %s445, %s447
      %p454 = scmp.eq.s32.totalorder %s59, 2
      %p455 = por %p453, %p454
      %p456 = scmp.ne.s32.totalorder %s447, %s448
      %p457 = scmp.eq.s32.totalorder %s59, 0
      %p458 = por %p456, %p457
      %p459 = scmp.ne.s32.totalorder %s447, %s448
      %p460 = scmp.eq.s32.totalorder %s60, 2
      %p461 = por %p459, %p460
      %p463 = scmp.ne.s32.totalorder %s448, %s462
      %p464 = scmp.eq.s32.totalorder %s60, 0
      %p465 = por %p463, %p464
      %s467 = sadd.s32 %s466, 1
      %p470 = scmp.eq.s32.totalorder %s54, 2
      %p471 = scmp.ne.s32.totalorder %s466, %s468
      %p472 = scmp.eq.s32.totalorder %s54, 0
      %p473 = por %p471, %p472
      %p474 = scmp.ne.s32.totalorder %s466, %s468
      %p475 = scmp.eq.s32.totalorder %s59, 2
      %p476 = por %p474, %p475
      %p477 = scmp.ne.s32.totalorder %s468, %s469
      %p478 = scmp.eq.s32.totalorder %s59, 0
      %p479 = por %p477, %p478
      %p480 = scmp.ne.s32.totalorder %s468, %s469
      %p481 = scmp.eq.s32.totalorder %s60, 2
      %p482 = por %p480, %p481
      %p484 = scmp.ne.s32.totalorder %s469, %s483
      %p485 = scmp.eq.s32.totalorder %s60, 0
      %p486 = por %p484, %p485
      %s488 = sadd.s32 %s487, 1
      %p491 = scmp.eq.s32.totalorder %s54, 2
      %p492 = scmp.ne.s32.totalorder %s487, %s489
      %p493 = scmp.eq.s32.totalorder %s54, 0
      %p494 = por %p492, %p493
      %p495 = scmp.ne.s32.totalorder %s487, %s489
      %p496 = scmp.eq.s32.totalorder %s59, 2
      %p497 = por %p495, %p496
      %p498 = scmp.ne.s32.totalorder %s489, %s490
      %p499 = scmp.eq.s32.totalorder %s59, 0
      %p500 = por %p498, %p499
      %p501 = scmp.ne.s32.totalorder %s489, %s490
      %p502 = scmp.eq.s32.totalorder %s60, 2
      %p503 = por %p501, %p502
      %p505 = scmp.ne.s32.totalorder %s490, %s504
      %p506 = scmp.eq.s32.totalorder %s60, 0
      %p507 = por %p505, %p506
      %s509 = sadd.s32 %s508, 1
      %p512 = scmp.eq.s32.totalorder %s54, 2
      %p513 = scmp.ne.s32.totalorder %s508, %s510
      %p514 = scmp.eq.s32.totalorder %s54, 0
      %p515 = por %p513, %p514
      %p516 = scmp.ne.s32.totalorder %s508, %s510
      %p517 = scmp.eq.s32.totalorder %s59, 2
      %p518 = por %p516, %p517
      %p519 = scmp.ne.s32.totalorder %s510, %s511
      %p520 = scmp.eq.s32.totalorder %s59, 0
      %p521 = por %p519, %p520
      %p522 = scmp.ne.s32.totalorder %s510, %s511
      %p523 = scmp.eq.s32.totalorder %s60, 2
      %p524 = por %p522, %p523
      %p526 = scmp.ne.s32.totalorder %s511, %s525
      %p527 = scmp.eq.s32.totalorder %s60, 0
      %p528 = por %p526, %p527
      %s530 = sadd.s32 %s529, 1
      %p533 = scmp.eq.s32.totalorder %s54, 2
      %p534 = scmp.ne.s32.totalorder %s529, %s531
      %p535 = scmp.eq.s32.totalorder %s54, 0
      %p536 = por %p534, %p535
      %p537 = scmp.ne.s32.totalorder %s529, %s531
      %p538 = scmp.eq.s32.totalorder %s59, 2
      %p539 = por %p537, %p538
      %p540 = scmp.ne.s32.totalorder %s531, %s532
      %p541 = scmp.eq.s32.totalorder %s59, 0
      %p542 = por %p540, %p541
      %p543 = scmp.ne.s32.totalorder %s531, %s532
      %p544 = scmp.eq.s32.totalorder %s60, 2
      %p545 = por %p543, %p544
      %p547 = scmp.ne.s32.totalorder %s532, %s546
      %p548 = scmp.eq.s32.totalorder %s60, 0
      %p549 = por %p547, %p548
      %s550 = ssub.s32 %s54, %s61
      %p551 = scmp.eq.s32.totalorder %s550, 0
      %s553 = sadd.s32 %s552, 1
      %s554 = scalar_select %p551, %s552, %s553
      %p557 = pneg %p551
      %p558 = scmp.eq.s32.totalorder %s54, 2
      %p559 = por %p557, %p558
      %p560 = scmp.ne.s32.totalorder %s552, %s555
      %p561 = scmp.eq.s32.totalorder %s54, 0
      %p562 = por %p560, %p561
      %p563 = scmp.ne.s32.totalorder %s552, %s555
      %p564 = scmp.eq.s32.totalorder %s59, 2
      %p565 = por %p563, %p564
      %p566 = scmp.ne.s32.totalorder %s555, %s556
      %p567 = scmp.eq.s32.totalorder %s59, 0
      %p568 = por %p566, %p567
      %p569 = scmp.ne.s32.totalorder %s555, %s556
      %p570 = scmp.eq.s32.totalorder %s60, 2
      %p571 = por %p569, %p570
      %p573 = scmp.ne.s32.totalorder %s556, %s572
      %p574 = scmp.eq.s32.totalorder %s60, 0
      %p575 = por %p573, %p574
      %s576 = ssub.s32 %s54, %s61
      %p577 = scmp.eq.s32.totalorder %s576, 0
      %s579 = sadd.s32 %s578, 1
      %s580 = scalar_select %p577, %s578, %s579
      %p583 = pneg %p577
      %p584 = scmp.eq.s32.totalorder %s54, 2
      %p585 = por %p583, %p584
      %p586 = scmp.ne.s32.totalorder %s578, %s581
      %p587 = scmp.eq.s32.totalorder %s54, 0
      %p588 = por %p586, %p587
      %p589 = scmp.ne.s32.totalorder %s578, %s581
      %p590 = scmp.eq.s32.totalorder %s59, 2
      %p591 = por %p589, %p590
      %p592 = scmp.ne.s32.totalorder %s581, %s582
      %p593 = scmp.eq.s32.totalorder %s59, 0
      %p594 = por %p592, %p593
      %p595 = scmp.ne.s32.totalorder %s581, %s582
      %p596 = scmp.eq.s32.totalorder %s60, 2
      %p597 = por %p595, %p596
      %p599 = scmp.ne.s32.totalorder %s582, %s598
      %p600 = scmp.eq.s32.totalorder %s60, 0
      %p601 = por %p599, %p600
      %p602 = scmp.le.s32.totalorder 1, %s54
      %p603 = scmp.lt.s32.totalorder %s54, 4
      %p604 = pnand %p602, %p603
      %p605 = pneg %p604
      // Predicated region
      $region9: #{tpu_custom_call.1} parent=5 // pred_check
        _
      $region10: #{tpu_custom_call.1} parent=5 // pred_check_branch
        %607 = sbr.rel (%p604) target = $region12
      $region11: #{tpu_custom_call.1} parent=5 // pred_region
        %s608 = ssub.s32 %s54, 1
        // Predicated region
        $region13: #{tpu_custom_call.1} parent=11 // pred_check
          %p609 = pneg %p101
        $region14: #{tpu_custom_call.1} parent=11 // pred_check_branch
          %611 = sbr.rel (%p609) target = $region16
        $region15: #{tpu_custom_call.1} parent=11 // pred_region
          %s613 = ssub.s32 256, 256
          %614 = vsyncadd [#allocation8], %s613
          %s615 = sshll.u32 [#allocation7], 4
          %s616 = int_to_ptr.vmem [resolvable:$true] %s615
          %621 = dma.hbm_to_vmem [thread:$0]  %s1, 256, %s616, [#allocation8], 128, 128, 8
        $region16: #{tpu_custom_call.1} parent=11 // pred_fallthru
          _
        // Predicated region
        $region17: #{tpu_custom_call.1} parent=11 // pred_check
          %p622 = pneg %p122
        $region18: #{tpu_custom_call.1} parent=11 // pred_check_branch
          %624 = sbr.rel (%p622) target = $region20
        $region19: #{tpu_custom_call.1} parent=11 // pred_region
          %s626 = ssub.s32 256, 256
          %627 = vsyncadd [#allocation8], %s626
          %s628 = sshll.u32 [#allocation9], 4
          %s629 = int_to_ptr.vmem [resolvable:$true] %s628
          %634 = dma.hbm_to_vmem [thread:$0]  %s2, 256, %s629, [#allocation8], 128, 128, 8
        $region20: #{tpu_custom_call.1} parent=11 // pred_fallthru
          _
        // Predicated region
        $region21: #{tpu_custom_call.1} parent=11 // pred_check
          %p635 = pneg %p143
        $region22: #{tpu_custom_call.1} parent=11 // pred_check_branch
          %637 = sbr.rel (%p635) target = $region24
        $region23: #{tpu_custom_call.1} parent=11 // pred_region
          %s639 = ssub.s32 256, 256
          %640 = vsyncadd [#allocation11], %s639
          %s641 = sshll.u32 [#allocation10], 4
          %s642 = int_to_ptr.vmem [resolvable:$true] %s641
          %647 = dma.hbm_to_vmem [thread:$0]  %s3, 256, %s642, [#allocation11], 64, 64, 4
        $region24: #{tpu_custom_call.1} parent=11 // pred_fallthru
          _
        // Predicated region
        $region25: #{tpu_custom_call.1} parent=11 // pred_check
          %p648 = pneg %p164
        $region26: #{tpu_custom_call.1} parent=11 // pred_check_branch
          %650 = sbr.rel (%p648) target = $region28
        $region27: #{tpu_custom_call.1} parent=11 // pred_region
          %s652 = ssub.s32 16, 16
          %653 = vsyncadd [#allocation11], %s652
          %s655 = sshll.u32 [#allocation12], 4
          %s656 = int_to_ptr.vmem [resolvable:$true] %s655
          %658 = dma.hbm_to_vmem [thread:$0]  %s4, 16, %s656, [#allocation11]
        $region28: #{tpu_custom_call.1} parent=11 // pred_fallthru
          _
        // Predicated region
        $region29: #{tpu_custom_call.1} parent=11 // pred_check
          %p659 = pneg %p185
        $region30: #{tpu_custom_call.1} parent=11 // pred_check_branch
          %661 = sbr.rel (%p659) target = $region32
        $region31: #{tpu_custom_call.1} parent=11 // pred_region
          %s663 = ssub.s32 512, 512
          %664 = vsyncadd [#allocation14], %s663
          %s665 = sshll.u32 [#allocation13], 4
          %s666 = int_to_ptr.vmem [resolvable:$true] %s665
          %671 = dma.hbm_to_vmem [thread:$0]  %s5, 512, %s666, [#allocation14], 64, 64, 4
        $region32: #{tpu_custom_call.1} parent=11 // pred_fallthru
          _
        // Predicated region
        $region33: #{tpu_custom_call.1} parent=11 // pred_check
          %p672 = pneg %p206
        $region34: #{tpu_custom_call.1} parent=11 // pred_check_branch
          %674 = sbr.rel (%p672) target = $region36
        $region35: #{tpu_custom_call.1} parent=11 // pred_region
          %s676 = ssub.s32 16, 16
          %677 = vsyncadd [#allocation14], %s676
          %s679 = sshll.u32 [#allocation15], 4
          %s680 = int_to_ptr.vmem [resolvable:$true] %s679
          %682 = dma.hbm_to_vmem [thread:$0]  %s6, 16, %s680, [#allocation14]
        $region36: #{tpu_custom_call.1} parent=11 // pred_fallthru
          _
        // Predicated region
        $region37: #{tpu_custom_call.1} parent=11 // pred_check
          %p683 = pneg %p227
        $region38: #{tpu_custom_call.1} parent=11 // pred_check_branch
          %685 = sbr.rel (%p683) target = $region40
        $region39: #{tpu_custom_call.1} parent=11 // pred_region
          %s687 = ssub.s32 256, 256
          %688 = vsyncadd [#allocation17], %s687
          %s689 = sshll.u32 [#allocation16], 4
          %s690 = int_to_ptr.vmem [resolvable:$true] %s689
          %695 = dma.hbm_to_vmem [thread:$0]  %s7, 256, %s690, [#allocation17], 64, 64, 4
        $region40: #{tpu_custom_call.1} parent=11 // pred_fallthru
          _
        // Predicated region
        $region41: #{tpu_custom_call.1} parent=11 // pred_check
          %p696 = pneg %p248
        $region42: #{tpu_custom_call.1} parent=11 // pred_check_branch
          %698 = sbr.rel (%p696) target = $region44
        $region43: #{tpu_custom_call.1} parent=11 // pred_region
          %s700 = ssub.s32 16, 16
          %701 = vsyncadd [#allocation17], %s700
          %s703 = sshll.u32 [#allocation18], 4
          %s704 = int_to_ptr.vmem [resolvable:$true] %s703
          %706 = dma.hbm_to_vmem [thread:$0]  %s8, 16, %s704, [#allocation17]
        $region44: #{tpu_custom_call.1} parent=11 // pred_fallthru
          _
        // Predicated region
        $region45: #{tpu_custom_call.1} parent=11 // pred_check
          %p707 = pneg %p269
        $region46: #{tpu_custom_call.1} parent=11 // pred_check_branch
          %709 = sbr.rel (%p707) target = $region48
        $region47: #{tpu_custom_call.1} parent=11 // pred_region
          %s711 = ssub.s32 256, 256
          %712 = vsyncadd [#allocation20], %s711
          %s713 = sshll.u32 [#allocation19], 4
          %s714 = int_to_ptr.vmem [resolvable:$true] %s713
          %719 = dma.hbm_to_vmem [thread:$0]  %s9, 256, %s714, [#allocation20], 64, 64, 4
        $region48: #{tpu_custom_call.1} parent=11 // pred_fallthru
          _
        // Predicated region
        $region49: #{tpu_custom_call.1} parent=11 // pred_check
          %p720 = pneg %p290
        $region50: #{tpu_custom_call.1} parent=11 // pred_check_branch
          %722 = sbr.rel (%p720) target = $region52
        $region51: #{tpu_custom_call.1} parent=11 // pred_region
          %s724 = ssub.s32 16, 16
          %725 = vsyncadd [#allocation20], %s724
          %s727 = sshll.u32 [#allocation21], 4
          %s728 = int_to_ptr.vmem [resolvable:$true] %s727
          %730 = dma.hbm_to_vmem [thread:$0]  %s10, 16, %s728, [#allocation20]
        $region52: #{tpu_custom_call.1} parent=11 // pred_fallthru
          _
        // Predicated region
        $region53: #{tpu_custom_call.1} parent=11 // pred_check
          %p731 = pneg %p311
        $region54: #{tpu_custom_call.1} parent=11 // pred_check_branch
          %733 = sbr.rel (%p731) target = $region56
        $region55: #{tpu_custom_call.1} parent=11 // pred_region
          %s735 = ssub.s32 256, 256
          %736 = vsyncadd [#allocation23], %s735
          %s737 = sshll.u32 [#allocation22], 4
          %s738 = int_to_ptr.vmem [resolvable:$true] %s737
          %743 = dma.hbm_to_vmem [thread:$0]  %s11, 256, %s738, [#allocation23], 64, 64, 4
        $region56: #{tpu_custom_call.1} parent=11 // pred_fallthru
          _
        // Predicated region
        $region57: #{tpu_custom_call.1} parent=11 // pred_check
          %p744 = pneg %p332
        $region58: #{tpu_custom_call.1} parent=11 // pred_check_branch
          %746 = sbr.rel (%p744) target = $region60
        $region59: #{tpu_custom_call.1} parent=11 // pred_region
          %s748 = ssub.s32 16, 16
          %749 = vsyncadd [#allocation23], %s748
          %s751 = sshll.u32 [#allocation24], 4
          %s752 = int_to_ptr.vmem [resolvable:$true] %s751
          %754 = dma.hbm_to_vmem [thread:$0]  %s12, 16, %s752, [#allocation23]
        $region60: #{tpu_custom_call.1} parent=11 // pred_fallthru
          _
        // Predicated region
        $region61: #{tpu_custom_call.1} parent=11 // pred_check
          %p755 = pneg %p353
        $region62: #{tpu_custom_call.1} parent=11 // pred_check_branch
          %757 = sbr.rel (%p755) target = $region64
        $region63: #{tpu_custom_call.1} parent=11 // pred_region
          %s759 = ssub.s32 128, 128
          %760 = vsyncadd [#allocation26], %s759
          %s761 = sshll.u32 [#allocation25], 4
          %s762 = int_to_ptr.vmem [resolvable:$true] %s761
          %767 = dma.hbm_to_vmem [thread:$0]  %s13, 128, %s762, [#allocation26], 64, 64, 4
        $region64: #{tpu_custom_call.1} parent=11 // pred_fallthru
          _
        // Predicated region
        $region65: #{tpu_custom_call.1} parent=11 // pred_check
          %p768 = pneg %p374
        $region66: #{tpu_custom_call.1} parent=11 // pred_check_branch
          %770 = sbr.rel (%p768) target = $region68
        $region67: #{tpu_custom_call.1} parent=11 // pred_region
          %s772 = ssub.s32 16, 16
          %773 = vsyncadd [#allocation26], %s772
          %s775 = sshll.u32 [#allocation27], 4
          %s776 = int_to_ptr.vmem [resolvable:$true] %s775
          %778 = dma.hbm_to_vmem [thread:$0]  %s14, 16, %s776, [#allocation26]
        $region68: #{tpu_custom_call.1} parent=11 // pred_fallthru
          _
        // Predicated region
        $region69: #{tpu_custom_call.1} parent=11 // pred_check
          %p779 = pneg %p395
        $region70: #{tpu_custom_call.1} parent=11 // pred_check_branch
          %781 = sbr.rel (%p779) target = $region72
        $region71: #{tpu_custom_call.1} parent=11 // pred_region
          %s783 = ssub.s32 128, 128
          %784 = vsyncadd [#allocation29], %s783
          %s785 = sshll.u32 [#allocation28], 4
          %s786 = int_to_ptr.vmem [resolvable:$true] %s785
          %791 = dma.hbm_to_vmem [thread:$0]  %s15, 128, %s786, [#allocation29], 64, 64, 4
        $region72: #{tpu_custom_call.1} parent=11 // pred_fallthru
          _
        // Predicated region
        $region73: #{tpu_custom_call.1} parent=11 // pred_check
          %p792 = pneg %p416
        $region74: #{tpu_custom_call.1} parent=11 // pred_check_branch
          %794 = sbr.rel (%p792) target = $region76
        $region75: #{tpu_custom_call.1} parent=11 // pred_region
          %s796 = ssub.s32 16, 16
          %797 = vsyncadd [#allocation29], %s796
          %s799 = sshll.u32 [#allocation30], 4
          %s800 = int_to_ptr.vmem [resolvable:$true] %s799
          %802 = dma.hbm_to_vmem [thread:$0]  %s16, 16, %s800, [#allocation29]
        $region76: #{tpu_custom_call.1} parent=11 // pred_fallthru
          _
        // Predicated region
        $region77: #{tpu_custom_call.1} parent=11 // pred_check
          %p803 = pneg %p437
        $region78: #{tpu_custom_call.1} parent=11 // pred_check_branch
          %805 = sbr.rel (%p803) target = $region80
        $region79: #{tpu_custom_call.1} parent=11 // pred_region
          %s807 = ssub.s32 16, 16
          %808 = vsyncadd [#allocation32], %s807
          %s810 = sshll.u32 [#allocation31], 4
          %s811 = int_to_ptr.vmem [resolvable:$true] %s810
          %813 = dma.hbm_to_vmem [thread:$0]  %s17, 16, %s811, [#allocation32]
        $region80: #{tpu_custom_call.1} parent=11 // pred_fallthru
          _
        // Predicated region
        $region81: #{tpu_custom_call.1} parent=11 // pred_check
          %p814 = pneg %p458
        $region82: #{tpu_custom_call.1} parent=11 // pred_check_branch
          %816 = sbr.rel (%p814) target = $region84
        $region83: #{tpu_custom_call.1} parent=11 // pred_region
          _
        $region84: #{tpu_custom_call.1} parent=11 // pred_fallthru
          _
        // Predicated region
        $region85: #{tpu_custom_call.1} parent=11 // pred_check
          %p817 = pneg %p479
        $region86: #{tpu_custom_call.1} parent=11 // pred_check_branch
          %819 = sbr.rel (%p817) target = $region88
        $region87: #{tpu_custom_call.1} parent=11 // pred_region
          %s821 = ssub.s32 128, 128
          %822 = vsyncadd [#allocation32], %s821
          %s823 = sshll.u32 [#allocation33], 4
          %s824 = int_to_ptr.vmem [resolvable:$true] %s823
          %829 = dma.hbm_to_vmem [thread:$0]  %s19, 128, %s824, [#allocation32], 64, 64, 4
        $region88: #{tpu_custom_call.1} parent=11 // pred_fallthru
          _
        // Predicated region
        $region89: #{tpu_custom_call.1} parent=11 // pred_check
          %p830 = pneg %p500
        $region90: #{tpu_custom_call.1} parent=11 // pred_check_branch
          %832 = sbr.rel (%p830) target = $region92
        $region91: #{tpu_custom_call.1} parent=11 // pred_region
          %s834 = ssub.s32 16, 16
          %835 = vsyncadd [#allocation35], %s834
          %s837 = sshll.u32 [#allocation34], 4
          %s838 = int_to_ptr.vmem [resolvable:$true] %s837
          %840 = dma.hbm_to_vmem [thread:$0]  %s20, 16, %s838, [#allocation35]
        $region92: #{tpu_custom_call.1} parent=11 // pred_fallthru
          _
        // Predicated region
        $region93: #{tpu_custom_call.1} parent=11 // pred_check
          %p841 = pneg %p521
        $region94: #{tpu_custom_call.1} parent=11 // pred_check_branch
          %843 = sbr.rel (%p841) target = $region96
        $region95: #{tpu_custom_call.1} parent=11 // pred_region
          %s845 = ssub.s32 16, 16
          %846 = vsyncadd [#allocation35], %s845
          %s848 = sshll.u32 [#allocation36], 4
          %s849 = int_to_ptr.vmem [resolvable:$true] %s848
          %851 = dma.hbm_to_vmem [thread:$0]  %s21, 16, %s849, [#allocation35]
        $region96: #{tpu_custom_call.1} parent=11 // pred_fallthru
          _
        // Predicated region
        $region97: #{tpu_custom_call.1} parent=11 // pred_check
          %p852 = pneg %p542
        $region98: #{tpu_custom_call.1} parent=11 // pred_check_branch
          %854 = sbr.rel (%p852) target = $region100
        $region99: #{tpu_custom_call.1} parent=11 // pred_region
          _
        $region100: #{tpu_custom_call.1} parent=11 // pred_fallthru
          _
      $region12: #{tpu_custom_call.1} parent=5 // pred_fallthru
        _
      %p855 = scmp.lt.s32.totalorder %s54, 3
      // Predicated region
      $region101: #{tpu_custom_call.1} parent=5 // pred_check
        %p856 = pneg %p855
      $region102: #{tpu_custom_call.1} parent=5 // pred_check_branch
        %858 = sbr.rel (%p856) target = $region104
      $region103: #{tpu_custom_call.1} parent=5 // pred_region
        // Predicated region
        $region105: #{tpu_custom_call.1} parent=103 // pred_check
          %p859 = pneg %p74
        $region106: #{tpu_custom_call.1} parent=103 // pred_check_branch
          %861 = sbr.rel (%p859) target = $region108
        $region107: #{tpu_custom_call.1} parent=103 // pred_region
          %s862 = sand.u32 %s64, 1
          %s863 = scalar_lea.sflag [#allocation5], %s862
          %s864 = sand.u32 %s64, 1
          %s865 = smul.addr %s864, 32
          %s866 = scalar_lea.vmem [#allocation4], %s865
          %s867 = smul.u32 2, %s54
          %s869 = ssub.s32 512, 512
          %870 = vsyncadd %s863, %s869
          %s871 = smul.addr %s867, 2
          %s872 = smul.addr %s871, 128
          %s873 = scalar_lea.hbm %s0, %s872
          %s874 = sshll.u32 %s866, 4
          %s875 = int_to_ptr.vmem [resolvable:$true] %s874
          %880 = dma.hbm_to_vmem [thread:$0]  %s873, 512, %s875, %s863, 128, 128, 8
        $region108: #{tpu_custom_call.1} parent=103 // pred_fallthru
          _
      $region104: #{tpu_custom_call.1} parent=5 // pred_fallthru
        _
      %p881 = scmp.le.s32.totalorder 1, %s54
      %p882 = scmp.lt.s32.totalorder %s54, 4
      %p883 = pnand %p881, %p882
      %p884 = pneg %p883
      // Predicated region
      $region109: #{tpu_custom_call.1} parent=5 // pred_check
        _
      $region110: #{tpu_custom_call.1} parent=5 // pred_check_branch
        %886 = sbr.rel (%p883) target = $region112
      $region111: #{tpu_custom_call.1} parent=5 // pred_region
        %s887 = ssub.s32 %s54, 1
        %s888 = sand.u32 %s67, 1
        %s889 = scalar_lea.sflag [#allocation5], %s888
        %s890 = sand.u32 %s67, 1
        %s891 = smul.addr %s890, 32
        %s892 = scalar_lea.vmem [#allocation4], %s891
        // Predicated region
        $region113: #{tpu_custom_call.1} parent=111 // pred_check
          %p893 = pneg %p80
        $region114: #{tpu_custom_call.1} parent=111 // pred_check_branch
          %895 = sbr.rel (%p893) target = $region116
        $region115: #{tpu_custom_call.1} parent=111 // pred_region
          %896 = dma.done %s889, 512
        $region116: #{tpu_custom_call.1} parent=111 // pred_fallthru
          _
        // Predicated region
        $region117: #{tpu_custom_call.1} parent=111 // pred_check
          %p897 = pneg %p101
        $region118: #{tpu_custom_call.1} parent=111 // pred_check_branch
          %899 = sbr.rel (%p897) target = $region120
        $region119: #{tpu_custom_call.1} parent=111 // pred_region
          %900 = dma.done [#allocation8], 256
        $region120: #{tpu_custom_call.1} parent=111 // pred_fallthru
          _
        // Predicated region
        $region121: #{tpu_custom_call.1} parent=111 // pred_check
          %p901 = pneg %p122
        $region122: #{tpu_custom_call.1} parent=111 // pred_check_branch
          %903 = sbr.rel (%p901) target = $region124
        $region123: #{tpu_custom_call.1} parent=111 // pred_region
          %904 = dma.done [#allocation8], 256
        $region124: #{tpu_custom_call.1} parent=111 // pred_fallthru
          _
        // Predicated region
        $region125: #{tpu_custom_call.1} parent=111 // pred_check
          %p905 = pneg %p143
        $region126: #{tpu_custom_call.1} parent=111 // pred_check_branch
          %907 = sbr.rel (%p905) target = $region128
        $region127: #{tpu_custom_call.1} parent=111 // pred_region
          %908 = dma.done [#allocation11], 256
        $region128: #{tpu_custom_call.1} parent=111 // pred_fallthru
          _
        // Predicated region
        $region129: #{tpu_custom_call.1} parent=111 // pred_check
          %p909 = pneg %p164
        $region130: #{tpu_custom_call.1} parent=111 // pred_check_branch
          %911 = sbr.rel (%p909) target = $region132
        $region131: #{tpu_custom_call.1} parent=111 // pred_region
          %912 = dma.done [#allocation11], 16
        $region132: #{tpu_custom_call.1} parent=111 // pred_fallthru
          _
        // Predicated region
        $region133: #{tpu_custom_call.1} parent=111 // pred_check
          %p913 = pneg %p185
        $region134: #{tpu_custom_call.1} parent=111 // pred_check_branch
          %915 = sbr.rel (%p913) target = $region136
        $region135: #{tpu_custom_call.1} parent=111 // pred_region
          %916 = dma.done [#allocation14], 512
        $region136: #{tpu_custom_call.1} parent=111 // pred_fallthru
          _
        // Predicated region
        $region137: #{tpu_custom_call.1} parent=111 // pred_check
          %p917 = pneg %p206
        $region138: #{tpu_custom_call.1} parent=111 // pred_check_branch
          %919 = sbr.rel (%p917) target = $region140
        $region139: #{tpu_custom_call.1} parent=111 // pred_region
          %920 = dma.done [#allocation14], 16
        $region140: #{tpu_custom_call.1} parent=111 // pred_fallthru
          _
        // Predicated region
        $region141: #{tpu_custom_call.1} parent=111 // pred_check
          %p921 = pneg %p227
        $region142: #{tpu_custom_call.1} parent=111 // pred_check_branch
          %923 = sbr.rel (%p921) target = $region144
        $region143: #{tpu_custom_call.1} parent=111 // pred_region
          %924 = dma.done [#allocation17], 256
        $region144: #{tpu_custom_call.1} parent=111 // pred_fallthru
          _
        // Predicated region
        $region145: #{tpu_custom_call.1} parent=111 // pred_check
          %p925 = pneg %p248
        $region146: #{tpu_custom_call.1} parent=111 // pred_check_branch
          %927 = sbr.rel (%p925) target = $region148
        $region147: #{tpu_custom_call.1} parent=111 // pred_region
          %928 = dma.done [#allocation17], 16
        $region148: #{tpu_custom_call.1} parent=111 // pred_fallthru
          _
        // Predicated region
        $region149: #{tpu_custom_call.1} parent=111 // pred_check
          %p929 = pneg %p269
        $region150: #{tpu_custom_call.1} parent=111 // pred_check_branch
          %931 = sbr.rel (%p929) target = $region152
        $region151: #{tpu_custom_call.1} parent=111 // pred_region
          %932 = dma.done [#allocation20], 256
        $region152: #{tpu_custom_call.1} parent=111 // pred_fallthru
          _
        // Predicated region
        $region153: #{tpu_custom_call.1} parent=111 // pred_check
          %p933 = pneg %p290
        $region154: #{tpu_custom_call.1} parent=111 // pred_check_branch
          %935 = sbr.rel (%p933) target = $region156
        $region155: #{tpu_custom_call.1} parent=111 // pred_region
          %936 = dma.done [#allocation20], 16
        $region156: #{tpu_custom_call.1} parent=111 // pred_fallthru
          _
        // Predicated region
        $region157: #{tpu_custom_call.1} parent=111 // pred_check
          %p937 = pneg %p311
        $region158: #{tpu_custom_call.1} parent=111 // pred_check_branch
          %939 = sbr.rel (%p937) target = $region160
        $region159: #{tpu_custom_call.1} parent=111 // pred_region
          %940 = dma.done [#allocation23], 256
        $region160: #{tpu_custom_call.1} parent=111 // pred_fallthru
          _
        // Predicated region
        $region161: #{tpu_custom_call.1} parent=111 // pred_check
          %p941 = pneg %p332
        $region162: #{tpu_custom_call.1} parent=111 // pred_check_branch
          %943 = sbr.rel (%p941) target = $region164
        $region163: #{tpu_custom_call.1} parent=111 // pred_region
          %944 = dma.done [#allocation23], 16
        $region164: #{tpu_custom_call.1} parent=111 // pred_fallthru
          _
        // Predicated region
        $region165: #{tpu_custom_call.1} parent=111 // pred_check
          %p945 = pneg %p353
        $region166: #{tpu_custom_call.1} parent=111 // pred_check_branch
          %947 = sbr.rel (%p945) target = $region168
        $region167: #{tpu_custom_call.1} parent=111 // pred_region
          %948 = dma.done [#allocation26], 128
        $region168: #{tpu_custom_call.1} parent=111 // pred_fallthru
          _
        // Predicated region
        $region169: #{tpu_custom_call.1} parent=111 // pred_check
          %p949 = pneg %p374
        $region170: #{tpu_custom_call.1} parent=111 // pred_check_branch
          %951 = sbr.rel (%p949) target = $region172
        $region171: #{tpu_custom_call.1} parent=111 // pred_region
          %952 = dma.done [#allocation26], 16
        $region172: #{tpu_custom_call.1} parent=111 // pred_fallthru
          _
        // Predicated region
        $region173: #{tpu_custom_call.1} parent=111 // pred_check
          %p953 = pneg %p395
        $region174: #{tpu_custom_call.1} parent=111 // pred_check_branch
          %955 = sbr.rel (%p953) target = $region176
        $region175: #{tpu_custom_call.1} parent=111 // pred_region
          %956 = dma.done [#allocation29], 128
        $region176: #{tpu_custom_call.1} parent=111 // pred_fallthru
          _
        // Predicated region
        $region177: #{tpu_custom_call.1} parent=111 // pred_check
          %p957 = pneg %p416
        $region178: #{tpu_custom_call.1} parent=111 // pred_check_branch
          %959 = sbr.rel (%p957) target = $region180
        $region179: #{tpu_custom_call.1} parent=111 // pred_region
          %960 = dma.done [#allocation29], 16
        $region180: #{tpu_custom_call.1} parent=111 // pred_fallthru
          _
        // Predicated region
        $region181: #{tpu_custom_call.1} parent=111 // pred_check
          %p961 = pneg %p437
        $region182: #{tpu_custom_call.1} parent=111 // pred_check_branch
          %963 = sbr.rel (%p961) target = $region184
        $region183: #{tpu_custom_call.1} parent=111 // pred_region
          %964 = dma.done [#allocation32], 16
        $region184: #{tpu_custom_call.1} parent=111 // pred_fallthru
          _
        // Predicated region
        $region185: #{tpu_custom_call.1} parent=111 // pred_check
          %p965 = pneg %p479
        $region186: #{tpu_custom_call.1} parent=111 // pred_check_branch
          %967 = sbr.rel (%p965) target = $region188
        $region187: #{tpu_custom_call.1} parent=111 // pred_region
          %968 = dma.done [#allocation32], 128
        $region188: #{tpu_custom_call.1} parent=111 // pred_fallthru
          _
        // Predicated region
        $region189: #{tpu_custom_call.1} parent=111 // pred_check
          %p969 = pneg %p500
        $region190: #{tpu_custom_call.1} parent=111 // pred_check_branch
          %971 = sbr.rel (%p969) target = $region192
        $region191: #{tpu_custom_call.1} parent=111 // pred_region
          %972 = dma.done [#allocation35], 16
        $region192: #{tpu_custom_call.1} parent=111 // pred_fallthru
          _
        // Predicated region
        $region193: #{tpu_custom_call.1} parent=111 // pred_check
          %p973 = pneg %p521
        $region194: #{tpu_custom_call.1} parent=111 // pred_check_branch
          %975 = sbr.rel (%p973) target = $region196
        $region195: #{tpu_custom_call.1} parent=111 // pred_region
          %976 = dma.done [#allocation35], 16
        $region196: #{tpu_custom_call.1} parent=111 // pred_fallthru
          _
        %s977 = sand.u32 %s67, 1
        %s978 = scalar_lea.sflag [#allocation5], %s977
        %s979 = sand.u32 %s67, 1
        %s980 = smul.addr %s979, 32
        %s981 = scalar_lea.vmem [#allocation4], %s980
        %p982 = pneg %p80
        %p983 = pneg %p77
        %p984 = pneg %p101
        %p985 = pneg %p98
        %p986 = pneg %p122
        %p987 = pneg %p119
        %p988 = pneg %p143
        %p989 = pneg %p140
        %p990 = pneg %p164
        %p991 = pneg %p161
        %p992 = pneg %p185
        %p993 = pneg %p182
        %p994 = pneg %p206
        %p995 = pneg %p203
        %p996 = pneg %p227
        %p997 = pneg %p224
        %p998 = pneg %p248
        %p999 = pneg %p245
        %p1000 = pneg %p269
        %p1001 = pneg %p266
        %p1002 = pneg %p290
        %p1003 = pneg %p287
        %p1004 = pneg %p311
        %p1005 = pneg %p308
        %p1006 = pneg %p332
        %p1007 = pneg %p329
        %p1008 = pneg %p353
        %p1009 = pneg %p350
        %p1010 = pneg %p374
        %p1011 = pneg %p371
        %p1012 = pneg %p395
        %p1013 = pneg %p392
        %p1014 = pneg %p416
        %p1015 = pneg %p413
        %p1016 = pneg %p437
        %p1017 = pneg %p434
        %p1018 = pneg %p458
        %p1019 = pneg %p455
        %p1020 = pneg %p479
        %p1021 = pneg %p476
        %p1022 = pneg %p500
        %p1023 = pneg %p497
        %p1024 = pneg %p521
        %p1025 = pneg %p518
        %p1026 = pneg %p542
        %p1027 = pneg %p539
        %p1028 = pneg %p568
        %p1029 = pneg %p565
        %s1030 = sand.u32 %s555, 1
        %s1031 = scalar_lea.sflag [#allocation6], %s1030
        %s1032 = sand.u32 %s555, 1
        %s1033 = smul.addr %s1032, 2
        %s1034 = scalar_lea.vmem [#allocation37], %s1033
        %p1035 = pneg %p594
        %p1036 = pneg %p591
        %s1037 = sand.u32 %s581, 1
        %s1038 = scalar_lea.sflag [#allocation39], %s1037
        %s1039 = sand.u32 %s581, 1
        %s1040 = smul.addr %s1039, 32
        %s1041 = scalar_lea.vmem [#allocation38], %s1040
        %s1042 = smul.u32 2, %s59
        %s1043 = smul.u32 4, %s59
        %v1045 = vld [vmem:[%s892] sm:$0xff]
        %v1046 = vld [vmem:[%s892 + $0x8] sm:$0xff]
        %v1047 = vld [vmem:[%s892 + $0x10] sm:$0xff]
        %v1048 = vld [vmem:[%s892 + $0x18] sm:$0xff]
        %v1049 = vpack.c.bf16 %v1046, %v1045
        %v1050 = vpack.c.bf16 %v1048, %v1047
        %v1051 = vld [vmem:[#allocation7] sm:$0xff]
        %v1052 = vld [vmem:[#allocation7 + $0x8] sm:$0xff]
        %v1053 = vld [vmem:[#allocation9] sm:$0xff]
        %v1054 = vld [vmem:[#allocation9 + $0x8] sm:$0xff]
        %v1055 = vld [vmem:[#allocation10] sm:$0xf]
        %v1056 = vld [vmem:[#allocation10 + $0x4] sm:$0xf]
        %v1057 = vld [vmem:[#allocation10 + $0x8] sm:$0xf]
        %v1058 = vld [vmem:[#allocation10 + $0xc] sm:$0xf]
        %v1059 = vld [vmem:[#allocation12] sm:$0x1]
        %v1061 = vlaneseq
        %v1062 = vshrl.u32 %v1061, 7
        %v1063 = vsub.s32 0, %v1062
        %v1064 = vrot.slane %v1059, %v1063
        %v1070 = vunpack.c.l.b16 %v1055
        %v1071 = vunpack.c.l.b16 %v1056
        %v1072 = vunpack.c.l.b16 %v1057
        %v1073 = vunpack.c.l.b16 %v1058
        %v1074 = vpack.c.b16 %v1071, %v1070
        %v1075 = vpack.c.b16 %v1073, %v1072
        %vm1078 = vcmask 261120
        %v1080 = vsel %vm1078, %v1049, 0
        %v1083 = vsel %vm1078, %v1050, 0
        %1085 = vmatprep.subr.bf16.mxu0 0
        %1086 = vmatpush1.bf16.msra.mxu0 %v1074
        %1087 = vmatprep.subr.bf16.mxu0 0
        %1088 = vmatpush1.bf16.msra.mxu0 %v1075
        %1089 = vmatprep.subr.bf16.mxu0 0
        %1090 = vmatpush1.bf16.msra.mxu0 0
        %1091 = vmatprep.subr.bf16.mxu0 0
        %1092 = vmatpush1.bf16.msra.mxu0 0
        %1093 = vmatprep.subr.bf16.mxu0 0
        %1094 = vmatpush1.bf16.msra.mxu0 0
        %1095 = vmatprep.subr.bf16.mxu0 0
        %1096 = vmatpush1.bf16.msra.mxu0 0
        %1097 = vmatprep.subr.bf16.mxu0 0
        %1098 = vmatpush1.bf16.msra.mxu0 0
        %1099 = vmatprep.subr.bf16.mxu0 0
        %1100 = vmatpush1.bf16.msra.mxu0 0
        %1101 = vmatprep.subr.bf16.mxu0 0
        %1102 = vmatpush1.bf16.msra.mxu0 0
        %1103 = vmatprep.subr.bf16.mxu0 0
        %1104 = vmatpush1.bf16.msra.mxu0 0
        %1105 = vmatprep.subr.bf16.mxu0 0
        %1106 = vmatpush1.bf16.msra.mxu0 0
        %1107 = vmatprep.subr.bf16.mxu0 0
        %1108 = vmatpush1.bf16.msra.mxu0 0
        %1109 = vmatprep.subr.bf16.mxu0 0
        %1110 = vmatpush1.bf16.msra.mxu0 0
        %1111 = vmatprep.subr.bf16.mxu0 0
        %1112 = vmatpush1.bf16.msra.mxu0 0
        %1113 = vmatprep.subr.bf16.mxu0 0
        %1114 = vmatpush1.bf16.msra.mxu0 0
        %1115 = vmatprep.subr.bf16.mxu0 0
        %1116 = vmatpush1.bf16.msra.mxu0 0
        %1117 = vmatprep.mubr.bf16.mxu0 0
        %1118 = vmatmul.mubr.bf16.gmra.mrb[0].mxu0 %v1080
        %v1119 = vpop.f32.mrb[0].mxu0
        %v1120 = vadd.f32 %v1064, %v1119
        %v1121 = vpop.f32.mrb[0].mxu0
        %v1122 = vpop.f32.mrb[0].mxu0
        %v1123 = vadd.f32 %v1064, %v1122
        %v1124 = vpop.f32.mrb[0].mxu0
        %1125 = vmatprep.mubr.bf16.mxu0 0
        %1126 = vmatmul.mubr.bf16.gmra.mrb[0].mxu0 %v1083
        %v1127 = vpop.f32.mrb[0].mxu0
        %v1128 = vadd.f32 %v1064, %v1127
        %v1129 = vpop.f32.mrb[0].mxu0
        %v1130 = vpop.f32.mrb[0].mxu0
        %v1131 = vadd.f32 %v1064, %v1130
        %v1132 = vpop.f32.mrb[0].mxu0
        %1133 = vdwg.mxu0
        %v1134 = vxor.u32 %v1120, 2147483648
        %v1135 = vxor.u32 %v1123, 2147483648
        %v1136 = vxor.u32 %v1128, 2147483648
        %v1137 = vxor.u32 %v1131, 2147483648
        %v1138 = vmul.f32 %v1134, 1.442695
        %v1139 = vpow.pop %v1138
        %v1140 = vmul.f32 %v1135, 1.442695
        %v1141 = vpow.pop %v1140
        %v1142 = vmul.f32 %v1136, 1.442695
        %v1143 = vpow.pop %v1142
        %v1144 = vmul.f32 %v1137, 1.442695
        %v1145 = vpow.pop %v1144
        %v1146 = vadd.f32 %v1139, 1.0
        %v1147 = vadd.f32 %v1141, 1.0
        %v1148 = vadd.f32 %v1143, 1.0
        %v1149 = vadd.f32 %v1145, 1.0
        %v1150 = vrcp.pop %v1146
        %v1151 = vmul.f32 1.0, %v1150
        %v1152 = vrcp.pop %v1147
        %v1153 = vmul.f32 1.0, %v1152
        %v1154 = vrcp.pop %v1148
        %v1155 = vmul.f32 1.0, %v1154
        %v1156 = vrcp.pop %v1149
        %v1157 = vmul.f32 1.0, %v1156
        %v1158 = vpack.c.bf16 %v1153, %v1151
        %v1159 = vpack.c.bf16 %v1157, %v1155
        %v1160 = vld [vmem:[#allocation13] sm:$0xf]
        %v1161 = vld [vmem:[#allocation13 + $0x4] sm:$0xf]
        %v1162 = vld [vmem:[#allocation13 + $0x8] sm:$0xf]
        %v1163 = vld [vmem:[#allocation13 + $0xc] sm:$0xf]
        %v1164 = vld [vmem:[#allocation13 + $0x10] sm:$0xf]
        %v1165 = vld [vmem:[#allocation13 + $0x14] sm:$0xf]
        %v1166 = vld [vmem:[#allocation13 + $0x18] sm:$0xf]
        %v1167 = vld [vmem:[#allocation13 + $0x1c] sm:$0xf]
        %v1168 = vld [vmem:[#allocation15] sm:$0x1]
        %v1170 = vlaneseq
        %v1171 = vshrl.u32 %v1170, 7
        %v1172 = vsub.s32 0, %v1171
        %v1173 = vrot.slane %v1168, %v1172
        %v1183 = vunpack.c.l.b16 %v1160
        %v1184 = vunpack.c.l.b16 %v1161
        %v1185 = vunpack.c.l.b16 %v1162
        %v1186 = vunpack.c.l.b16 %v1163
        %v1187 = vunpack.c.l.b16 %v1164
        %v1188 = vunpack.c.l.b16 %v1165
        %v1189 = vunpack.c.l.b16 %v1166
        %v1190 = vunpack.c.l.b16 %v1167
        %v1191 = vpack.c.b16 %v1184, %v1183
        %v1192 = vpack.c.b16 %v1186, %v1185
        %v1193 = vpack.c.b16 %v1188, %v1187
        %v1194 = vpack.c.b16 %v1190, %v1189
        %vm1199 = vcmask 523264
        %v1201 = vsel %vm1199, %v1158, 0
        %v1204 = vsel %vm1199, %v1159, 0
        %1206 = vmatprep.subr.bf16.mxu0 0
        %1207 = vmatpush1.bf16.msra.mxu0 %v1191
        %1208 = vmatprep.subr.bf16.mxu0 0
        %1209 = vmatpush1.bf16.msra.mxu0 %v1192
        %1210 = vmatprep.subr.bf16.mxu0 0
        %1211 = vmatpush1.bf16.msra.mxu0 %v1193
        %1212 = vmatprep.subr.bf16.mxu0 0
        %1213 = vmatpush1.bf16.msra.mxu0 %v1194
        %1214 = vmatprep.subr.bf16.mxu0 0
        %1215 = vmatpush1.bf16.msra.mxu0 0
        %1216 = vmatprep.subr.bf16.mxu0 0
        %1217 = vmatpush1.bf16.msra.mxu0 0
        %1218 = vmatprep.subr.bf16.mxu0 0
        %1219 = vmatpush1.bf16.msra.mxu0 0
        %1220 = vmatprep.subr.bf16.mxu0 0
        %1221 = vmatpush1.bf16.msra.mxu0 0
        %1222 = vmatprep.subr.bf16.mxu0 0
        %1223 = vmatpush1.bf16.msra.mxu0 0
        %1224 = vmatprep.subr.bf16.mxu0 0
        %1225 = vmatpush1.bf16.msra.mxu0 0
        %1226 = vmatprep.subr.bf16.mxu0 0
        %1227 = vmatpush1.bf16.msra.mxu0 0
        %1228 = vmatprep.subr.bf16.mxu0 0
        %1229 = vmatpush1.bf16.msra.mxu0 0
        %1230 = vmatprep.subr.bf16.mxu0 0
        %1231 = vmatpush1.bf16.msra.mxu0 0
        %1232 = vmatprep.subr.bf16.mxu0 0
        %1233 = vmatpush1.bf16.msra.mxu0 0
        %1234 = vmatprep.subr.bf16.mxu0 0
        %1235 = vmatpush1.bf16.msra.mxu0 0
        %1236 = vmatprep.subr.bf16.mxu0 0
        %1237 = vmatpush1.bf16.msra.mxu0 0
        %1238 = vmatprep.mubr.bf16.mxu0 0
        %1239 = vmatmul.mubr.bf16.gmra.mrb[0].mxu0 %v1201
        %v1240 = vpop.f32.mrb[0].mxu0
        %v1241 = vadd.f32 %v1173, %v1240
        %v1242 = vpop.f32.mrb[0].mxu0
        %v1243 = vpop.f32.mrb[0].mxu0
        %v1244 = vadd.f32 %v1173, %v1243
        %v1245 = vpop.f32.mrb[0].mxu0
        %1246 = vmatprep.mubr.bf16.mxu0 0
        %1247 = vmatmul.mubr.bf16.gmra.mrb[0].mxu0 %v1204
        %v1248 = vpop.f32.mrb[0].mxu0
        %v1249 = vadd.f32 %v1173, %v1248
        %v1250 = vpop.f32.mrb[0].mxu0
        %v1251 = vpop.f32.mrb[0].mxu0
        %v1252 = vadd.f32 %v1173, %v1251
        %v1253 = vpop.f32.mrb[0].mxu0
        %1254 = vdwg.mxu0
        %v1255 = vxor.u32 %v1241, 2147483648
        %v1256 = vxor.u32 %v1244, 2147483648
        %v1257 = vxor.u32 %v1249, 2147483648
        %v1258 = vxor.u32 %v1252, 2147483648
        %v1259 = vmul.f32 %v1255, 1.442695
        %v1260 = vpow.pop %v1259
        %v1261 = vmul.f32 %v1256, 1.442695
        %v1262 = vpow.pop %v1261
        %v1263 = vmul.f32 %v1257, 1.442695
        %v1264 = vpow.pop %v1263
        %v1265 = vmul.f32 %v1258, 1.442695
        %v1266 = vpow.pop %v1265
        %v1267 = vadd.f32 %v1260, 1.0
        %v1268 = vadd.f32 %v1262, 1.0
        %v1269 = vadd.f32 %v1264, 1.0
        %v1270 = vadd.f32 %v1266, 1.0
        %v1271 = vrcp.pop %v1267
        %v1272 = vmul.f32 1.0, %v1271
        %v1273 = vrcp.pop %v1268
        %v1274 = vmul.f32 1.0, %v1273
        %v1275 = vrcp.pop %v1269
        %v1276 = vmul.f32 1.0, %v1275
        %v1277 = vrcp.pop %v1270
        %v1278 = vmul.f32 1.0, %v1277
        %v1279 = vpack.c.bf16 %v1274, %v1272
        %v1280 = vpack.c.bf16 %v1278, %v1276
        %v1281 = vld [vmem:[#allocation16] sm:$0xf]
        %v1282 = vld [vmem:[#allocation16 + $0x4] sm:$0xf]
        %v1283 = vld [vmem:[#allocation16 + $0x8] sm:$0xf]
        %v1284 = vld [vmem:[#allocation16 + $0xc] sm:$0xf]
        %v1285 = vld [vmem:[#allocation18] sm:$0x1]
        %v1287 = vlaneseq
        %v1288 = vshrl.u32 %v1287, 7
        %v1289 = vsub.s32 0, %v1288
        %v1290 = vrot.slane %v1285, %v1289
        %v1296 = vunpack.c.l.b16 %v1281
        %v1297 = vunpack.c.l.b16 %v1282
        %v1298 = vunpack.c.l.b16 %v1283
        %v1299 = vunpack.c.l.b16 %v1284
        %v1300 = vpack.c.b16 %v1297, %v1296
        %v1301 = vpack.c.b16 %v1299, %v1298
        %v1305 = vsel %vm1078, %v1279, 0
        %v1308 = vsel %vm1078, %v1280, 0
        %1310 = vmatprep.subr.bf16.mxu0 0
        %1311 = vmatpush1.bf16.msra.mxu0 %v1300
        %1312 = vmatprep.subr.bf16.mxu0 0
        %1313 = vmatpush1.bf16.msra.mxu0 %v1301
        %1314 = vmatprep.subr.bf16.mxu0 0
        %1315 = vmatpush1.bf16.msra.mxu0 0
        %1316 = vmatprep.subr.bf16.mxu0 0
        %1317 = vmatpush1.bf16.msra.mxu0 0
        %1318 = vmatprep.subr.bf16.mxu0 0
        %1319 = vmatpush1.bf16.msra.mxu0 0
        %1320 = vmatprep.subr.bf16.mxu0 0
        %1321 = vmatpush1.bf16.msra.mxu0 0
        %1322 = vmatprep.subr.bf16.mxu0 0
        %1323 = vmatpush1.bf16.msra.mxu0 0
        %1324 = vmatprep.subr.bf16.mxu0 0
        %1325 = vmatpush1.bf16.msra.mxu0 0
        %1326 = vmatprep.subr.bf16.mxu0 0
        %1327 = vmatpush1.bf16.msra.mxu0 0
        %1328 = vmatprep.subr.bf16.mxu0 0
        %1329 = vmatpush1.bf16.msra.mxu0 0
        %1330 = vmatprep.subr.bf16.mxu0 0
        %1331 = vmatpush1.bf16.msra.mxu0 0
        %1332 = vmatprep.subr.bf16.mxu0 0
        %1333 = vmatpush1.bf16.msra.mxu0 0
        %1334 = vmatprep.subr.bf16.mxu0 0
        %1335 = vmatpush1.bf16.msra.mxu0 0
        %1336 = vmatprep.subr.bf16.mxu0 0
        %1337 = vmatpush1.bf16.msra.mxu0 0
        %1338 = vmatprep.subr.bf16.mxu0 0
        %1339 = vmatpush1.bf16.msra.mxu0 0
        %1340 = vmatprep.subr.bf16.mxu0 0
        %1341 = vmatpush1.bf16.msra.mxu0 0
        %1342 = vmatprep.mubr.bf16.mxu0 0
        %1343 = vmatmul.mubr.bf16.gmra.mrb[0].mxu0 %v1305
        %v1344 = vpop.f32.mrb[0].mxu0
        %v1345 = vadd.f32 %v1290, %v1344
        %v1346 = vpop.f32.mrb[0].mxu0
        %v1347 = vpop.f32.mrb[0].mxu0
        %v1348 = vadd.f32 %v1290, %v1347
        %v1349 = vpop.f32.mrb[0].mxu0
        %1350 = vmatprep.mubr.bf16.mxu0 0
        %1351 = vmatmul.mubr.bf16.gmra.mrb[0].mxu0 %v1308
        %v1352 = vpop.f32.mrb[0].mxu0
        %v1353 = vadd.f32 %v1290, %v1352
        %v1354 = vpop.f32.mrb[0].mxu0
        %v1355 = vpop.f32.mrb[0].mxu0
        %v1356 = vadd.f32 %v1290, %v1355
        %v1357 = vpop.f32.mrb[0].mxu0
        %1358 = vdwg.mxu0
        %v1359 = vld [vmem:[#allocation19] sm:$0xf]
        %v1360 = vld [vmem:[#allocation19 + $0x4] sm:$0xf]
        %v1361 = vld [vmem:[#allocation19 + $0x8] sm:$0xf]
        %v1362 = vld [vmem:[#allocation19 + $0xc] sm:$0xf]
        %v1363 = vld [vmem:[#allocation21] sm:$0x1]
        %v1365 = vlaneseq
        %v1366 = vshrl.u32 %v1365, 7
        %v1367 = vsub.s32 0, %v1366
        %v1368 = vrot.slane %v1363, %v1367
        %v1374 = vunpack.c.l.b16 %v1359
        %v1375 = vunpack.c.l.b16 %v1360
        %v1376 = vunpack.c.l.b16 %v1361
        %v1377 = vunpack.c.l.b16 %v1362
        %v1378 = vpack.c.b16 %v1375, %v1374
        %v1379 = vpack.c.b16 %v1377, %v1376
        %1382 = vmatprep.subr.bf16.mxu0 0
        %1383 = vmatpush1.bf16.msra.mxu0 %v1378
        %1384 = vmatprep.subr.bf16.mxu0 0
        %1385 = vmatpush1.bf16.msra.mxu0 %v1379
        %1386 = vmatprep.subr.bf16.mxu0 0
        %1387 = vmatpush1.bf16.msra.mxu0 0
        %1388 = vmatprep.subr.bf16.mxu0 0
        %1389 = vmatpush1.bf16.msra.mxu0 0
        %1390 = vmatprep.subr.bf16.mxu0 0
        %1391 = vmatpush1.bf16.msra.mxu0 0
        %1392 = vmatprep.subr.bf16.mxu0 0
        %1393 = vmatpush1.bf16.msra.mxu0 0
        %1394 = vmatprep.subr.bf16.mxu0 0
        %1395 = vmatpush1.bf16.msra.mxu0 0
        %1396 = vmatprep.subr.bf16.mxu0 0
        %1397 = vmatpush1.bf16.msra.mxu0 0
        %1398 = vmatprep.subr.bf16.mxu0 0
        %1399 = vmatpush1.bf16.msra.mxu0 0
        %1400 = vmatprep.subr.bf16.mxu0 0
        %1401 = vmatpush1.bf16.msra.mxu0 0
        %1402 = vmatprep.subr.bf16.mxu0 0
        %1403 = vmatpush1.bf16.msra.mxu0 0
        %1404 = vmatprep.subr.bf16.mxu0 0
        %1405 = vmatpush1.bf16.msra.mxu0 0
        %1406 = vmatprep.subr.bf16.mxu0 0
        %1407 = vmatpush1.bf16.msra.mxu0 0
        %1408 = vmatprep.subr.bf16.mxu0 0
        %1409 = vmatpush1.bf16.msra.mxu0 0
        %1410 = vmatprep.subr.bf16.mxu0 0
        %1411 = vmatpush1.bf16.msra.mxu0 0
        %1412 = vmatprep.subr.bf16.mxu0 0
        %1413 = vmatpush1.bf16.msra.mxu0 0
        %1414 = vmatprep.mubr.bf16.mxu0 0
        %1415 = vmatmul.mubr.bf16.gmra.mrb[0].mxu0 %v1305
        %v1416 = vpop.f32.mrb[0].mxu0
        %v1417 = vadd.f32 %v1368, %v1416
        %v1418 = vpop.f32.mrb[0].mxu0
        %v1419 = vpop.f32.mrb[0].mxu0
        %v1420 = vadd.f32 %v1368, %v1419
        %v1421 = vpop.f32.mrb[0].mxu0
        %1422 = vmatprep.mubr.bf16.mxu0 0
        %1423 = vmatmul.mubr.bf16.gmra.mrb[0].mxu0 %v1308
        %v1424 = vpop.f32.mrb[0].mxu0
        %v1425 = vadd.f32 %v1368, %v1424
        %v1426 = vpop.f32.mrb[0].mxu0
        %v1427 = vpop.f32.mrb[0].mxu0
        %v1428 = vadd.f32 %v1368, %v1427
        %v1429 = vpop.f32.mrb[0].mxu0
        %1430 = vdwg.mxu0
        %v1431 = vmul.f32 %v1417, 0.5
        %v1432 = vmul.f32 %v1420, 0.5
        %v1433 = vmul.f32 %v1425, 0.5
        %v1434 = vmul.f32 %v1428, 0.5
        %v1435 = vmul.f32 %v1431, 1.442695
        %v1436 = vpow.pop %v1435
        %v1437 = vmul.f32 %v1432, 1.442695
        %v1438 = vpow.pop %v1437
        %v1439 = vmul.f32 %v1433, 1.442695
        %v1440 = vpow.pop %v1439
        %v1441 = vmul.f32 %v1434, 1.442695
        %v1442 = vpow.pop %v1441
        %v1443 = vmul.f32 %v1051, %v1436
        %v1444 = vmul.f32 %v1052, %v1438
        %v1445 = vmul.f32 %v1051, %v1440
        %v1446 = vmul.f32 %v1052, %v1442
        %v1447 = vadd.f32 %v1345, %v1443
        %v1448 = vadd.f32 %v1348, %v1444
        %v1449 = vadd.f32 %v1353, %v1445
        %v1450 = vadd.f32 %v1356, %v1446
        %v1451 = vld [vmem:[#allocation22] sm:$0xf]
        %v1452 = vld [vmem:[#allocation22 + $0x4] sm:$0xf]
        %v1453 = vld [vmem:[#allocation22 + $0x8] sm:$0xf]
        %v1454 = vld [vmem:[#allocation22 + $0xc] sm:$0xf]
        %v1455 = vld [vmem:[#allocation24] sm:$0x1]
        %v1457 = vlaneseq
        %v1458 = vshrl.u32 %v1457, 7
        %v1459 = vsub.s32 0, %v1458
        %v1460 = vrot.slane %v1455, %v1459
        %v1466 = vunpack.c.l.b16 %v1451
        %v1467 = vunpack.c.l.b16 %v1452
        %v1468 = vunpack.c.l.b16 %v1453
        %v1469 = vunpack.c.l.b16 %v1454
        %v1470 = vpack.c.b16 %v1467, %v1466
        %v1471 = vpack.c.b16 %v1469, %v1468
        %1474 = vmatprep.subr.bf16.mxu0 0
        %1475 = vmatpush1.bf16.msra.mxu0 %v1470
        %1476 = vmatprep.subr.bf16.mxu0 0
        %1477 = vmatpush1.bf16.msra.mxu0 %v1471
        %1478 = vmatprep.subr.bf16.mxu0 0
        %1479 = vmatpush1.bf16.msra.mxu0 0
        %1480 = vmatprep.subr.bf16.mxu0 0
        %1481 = vmatpush1.bf16.msra.mxu0 0
        %1482 = vmatprep.subr.bf16.mxu0 0
        %1483 = vmatpush1.bf16.msra.mxu0 0
        %1484 = vmatprep.subr.bf16.mxu0 0
        %1485 = vmatpush1.bf16.msra.mxu0 0
        %1486 = vmatprep.subr.bf16.mxu0 0
        %1487 = vmatpush1.bf16.msra.mxu0 0
        %1488 = vmatprep.subr.bf16.mxu0 0
        %1489 = vmatpush1.bf16.msra.mxu0 0
        %1490 = vmatprep.subr.bf16.mxu0 0
        %1491 = vmatpush1.bf16.msra.mxu0 0
        %1492 = vmatprep.subr.bf16.mxu0 0
        %1493 = vmatpush1.bf16.msra.mxu0 0
        %1494 = vmatprep.subr.bf16.mxu0 0
        %1495 = vmatpush1.bf16.msra.mxu0 0
        %1496 = vmatprep.subr.bf16.mxu0 0
        %1497 = vmatpush1.bf16.msra.mxu0 0
        %1498 = vmatprep.subr.bf16.mxu0 0
        %1499 = vmatpush1.bf16.msra.mxu0 0
        %1500 = vmatprep.subr.bf16.mxu0 0
        %1501 = vmatpush1.bf16.msra.mxu0 0
        %1502 = vmatprep.subr.bf16.mxu0 0
        %1503 = vmatpush1.bf16.msra.mxu0 0
        %1504 = vmatprep.subr.bf16.mxu0 0
        %1505 = vmatpush1.bf16.msra.mxu0 0
        %1506 = vmatprep.mubr.bf16.mxu0 0
        %1507 = vmatmul.mubr.bf16.gmra.mrb[0].mxu0 %v1080
        %v1508 = vpop.f32.mrb[0].mxu0
        %v1509 = vadd.f32 %v1460, %v1508
        %v1510 = vpop.f32.mrb[0].mxu0
        %v1511 = vpop.f32.mrb[0].mxu0
        %v1512 = vadd.f32 %v1460, %v1511
        %v1513 = vpop.f32.mrb[0].mxu0
        %1514 = vmatprep.mubr.bf16.mxu0 0
        %1515 = vmatmul.mubr.bf16.gmra.mrb[0].mxu0 %v1083
        %v1516 = vpop.f32.mrb[0].mxu0
        %v1517 = vadd.f32 %v1460, %v1516
        %v1518 = vpop.f32.mrb[0].mxu0
        %v1519 = vpop.f32.mrb[0].mxu0
        %v1520 = vadd.f32 %v1460, %v1519
        %v1521 = vpop.f32.mrb[0].mxu0
        %1522 = vdwg.mxu0
        %v1523 = vpack.c.bf16 %v1512, %v1509
        %v1524 = vpack.c.bf16 %v1520, %v1517
        %v1525 = vld [vmem:[#allocation25] sm:$0xf]
        %v1526 = vld [vmem:[#allocation25 + $0x4] sm:$0xf]
        %v1527 = vld [vmem:[#allocation27] sm:$0x1]
        %v1529 = vlaneseq
        %v1530 = vshrl.u32 %v1529, 7
        %v1531 = vsub.s32 0, %v1530
        %v1532 = vrot.slane %v1527, %v1531
        %v1536 = vunpack.c.l.b16 %v1525
        %v1537 = vunpack.c.l.b16 %v1526
        %v1538 = vpack.c.b16 %v1537, %v1536
        %vm1540 = vcmask 130048
        %v1542 = vsel %vm1540, %v1523, 0
        %v1545 = vsel %vm1540, %v1524, 0
        %1547 = vmatprep.subr.bf16.mxu0 0
        %1548 = vmatpush1.bf16.msra.mxu0 %v1538
        %1549 = vmatprep.subr.bf16.mxu0 0
        %1550 = vmatpush1.bf16.msra.mxu0 0
        %1551 = vmatprep.subr.bf16.mxu0 0
        %1552 = vmatpush1.bf16.msra.mxu0 0
        %1553 = vmatprep.subr.bf16.mxu0 0
        %1554 = vmatpush1.bf16.msra.mxu0 0
        %1555 = vmatprep.subr.bf16.mxu0 0
        %1556 = vmatpush1.bf16.msra.mxu0 0
        %1557 = vmatprep.subr.bf16.mxu0 0
        %1558 = vmatpush1.bf16.msra.mxu0 0
        %1559 = vmatprep.subr.bf16.mxu0 0
        %1560 = vmatpush1.bf16.msra.mxu0 0
        %1561 = vmatprep.subr.bf16.mxu0 0
        %1562 = vmatpush1.bf16.msra.mxu0 0
        %1563 = vmatprep.subr.bf16.mxu0 0
        %1564 = vmatpush1.bf16.msra.mxu0 0
        %1565 = vmatprep.subr.bf16.mxu0 0
        %1566 = vmatpush1.bf16.msra.mxu0 0
        %1567 = vmatprep.subr.bf16.mxu0 0
        %1568 = vmatpush1.bf16.msra.mxu0 0
        %1569 = vmatprep.subr.bf16.mxu0 0
        %1570 = vmatpush1.bf16.msra.mxu0 0
        %1571 = vmatprep.subr.bf16.mxu0 0
        %1572 = vmatpush1.bf16.msra.mxu0 0
        %1573 = vmatprep.subr.bf16.mxu0 0
        %1574 = vmatpush1.bf16.msra.mxu0 0
        %1575 = vmatprep.subr.bf16.mxu0 0
        %1576 = vmatpush1.bf16.msra.mxu0 0
        %1577 = vmatprep.subr.bf16.mxu0 0
        %1578 = vmatpush1.bf16.msra.mxu0 0
        %1579 = vmatprep.mubr.bf16.mxu0 0
        %1580 = vmatmul.mubr.bf16.gmra.mrb[0].mxu0 %v1542
        %v1581 = vpop.f32.mrb[0].mxu0
        %v1582 = vadd.f32 %v1532, %v1581
        %v1583 = vpop.f32.mrb[0].mxu0
        %v1584 = vpop.f32.mrb[0].mxu0
        %v1585 = vadd.f32 %v1532, %v1584
        %v1586 = vpop.f32.mrb[0].mxu0
        %1587 = vmatprep.mubr.bf16.mxu0 0
        %1588 = vmatmul.mubr.bf16.gmra.mrb[0].mxu0 %v1545
        %v1589 = vpop.f32.mrb[0].mxu0
        %v1590 = vadd.f32 %v1532, %v1589
        %v1591 = vpop.f32.mrb[0].mxu0
        %v1592 = vpop.f32.mrb[0].mxu0
        %v1593 = vadd.f32 %v1532, %v1592
        %v1594 = vpop.f32.mrb[0].mxu0
        %1595 = vdwg.mxu0
        %v1596 = vtanh.pop %v1582
        %v1597 = vtanh.pop %v1585
        %v1598 = vtanh.pop %v1590
        %v1599 = vtanh.pop %v1593
        %v1600 = vld [vmem:[#allocation28] sm:$0xf]
        %v1601 = vld [vmem:[#allocation28 + $0x4] sm:$0xf]
        %v1602 = vld [vmem:[#allocation30] sm:$0x1]
        %v1604 = vlaneseq
        %v1605 = vshrl.u32 %v1604, 7
        %v1606 = vsub.s32 0, %v1605
        %v1607 = vrot.slane %v1602, %v1606
        %v1611 = vunpack.c.l.b16 %v1600
        %v1612 = vunpack.c.l.b16 %v1601
        %v1613 = vpack.c.b16 %v1612, %v1611
        %1615 = vmatprep.subr.bf16.mxu0 0
        %1616 = vmatpush1.bf16.msra.mxu0 %v1613
        %1617 = vmatprep.subr.bf16.mxu0 0
        %1618 = vmatpush1.bf16.msra.mxu0 0
        %1619 = vmatprep.subr.bf16.mxu0 0
        %1620 = vmatpush1.bf16.msra.mxu0 0
        %1621 = vmatprep.subr.bf16.mxu0 0
        %1622 = vmatpush1.bf16.msra.mxu0 0
        %1623 = vmatprep.subr.bf16.mxu0 0
        %1624 = vmatpush1.bf16.msra.mxu0 0
        %1625 = vmatprep.subr.bf16.mxu0 0
        %1626 = vmatpush1.bf16.msra.mxu0 0
        %1627 = vmatprep.subr.bf16.mxu0 0
        %1628 = vmatpush1.bf16.msra.mxu0 0
        %1629 = vmatprep.subr.bf16.mxu0 0
        %1630 = vmatpush1.bf16.msra.mxu0 0
        %1631 = vmatprep.subr.bf16.mxu0 0
        %1632 = vmatpush1.bf16.msra.mxu0 0
        %1633 = vmatprep.subr.bf16.mxu0 0
        %1634 = vmatpush1.bf16.msra.mxu0 0
        %1635 = vmatprep.subr.bf16.mxu0 0
        %1636 = vmatpush1.bf16.msra.mxu0 0
        %1637 = vmatprep.subr.bf16.mxu0 0
        %1638 = vmatpush1.bf16.msra.mxu0 0
        %1639 = vmatprep.subr.bf16.mxu0 0
        %1640 = vmatpush1.bf16.msra.mxu0 0
        %1641 = vmatprep.subr.bf16.mxu0 0
        %1642 = vmatpush1.bf16.msra.mxu0 0
        %1643 = vmatprep.subr.bf16.mxu0 0
        %1644 = vmatpush1.bf16.msra.mxu0 0
        %1645 = vmatprep.subr.bf16.mxu0 0
        %1646 = vmatpush1.bf16.msra.mxu0 0
        %1647 = vmatprep.mubr.bf16.mxu0 0
        %1648 = vmatmul.mubr.bf16.gmra.mrb[0].mxu0 %v1542
        %v1649 = vpop.f32.mrb[0].mxu0
        %v1650 = vadd.f32 %v1607, %v1649
        %v1651 = vpop.f32.mrb[0].mxu0
        %v1652 = vpop.f32.mrb[0].mxu0
        %v1653 = vadd.f32 %v1607, %v1652
        %v1654 = vpop.f32.mrb[0].mxu0
        %1655 = vmatprep.mubr.bf16.mxu0 0
        %1656 = vmatmul.mubr.bf16.gmra.mrb[0].mxu0 %v1545
        %v1657 = vpop.f32.mrb[0].mxu0
        %v1658 = vadd.f32 %v1607, %v1657
        %v1659 = vpop.f32.mrb[0].mxu0
        %v1660 = vpop.f32.mrb[0].mxu0
        %v1661 = vadd.f32 %v1607, %v1660
        %v1662 = vpop.f32.mrb[0].mxu0
        %1663 = vdwg.mxu0
        %v1664 = vxor.u32 %v1650, 2147483648
        %v1665 = vxor.u32 %v1653, 2147483648
        %v1666 = vxor.u32 %v1658, 2147483648
        %v1667 = vxor.u32 %v1661, 2147483648
        %v1668 = vmul.f32 %v1664, 1.442695
        %v1669 = vpow.pop %v1668
        %v1670 = vmul.f32 %v1665, 1.442695
        %v1671 = vpow.pop %v1670
        %v1672 = vmul.f32 %v1666, 1.442695
        %v1673 = vpow.pop %v1672
        %v1674 = vmul.f32 %v1667, 1.442695
        %v1675 = vpow.pop %v1674
        %v1676 = vadd.f32 %v1669, 1.0
        %v1677 = vadd.f32 %v1671, 1.0
        %v1678 = vadd.f32 %v1673, 1.0
        %v1679 = vadd.f32 %v1675, 1.0
        %v1680 = vrcp.pop %v1676
        %v1681 = vmul.f32 1.0, %v1680
        %v1682 = vrcp.pop %v1677
        %v1683 = vmul.f32 1.0, %v1682
        %v1684 = vrcp.pop %v1678
        %v1685 = vmul.f32 1.0, %v1684
        %v1686 = vrcp.pop %v1679
        %v1687 = vmul.f32 1.0, %v1686
        %v1688 = vmul.f32 %v1596, %v1681
        %v1689 = vmul.f32 %v1597, %v1683
        %v1690 = vmul.f32 %v1598, %v1685
        %v1691 = vmul.f32 %v1599, %v1687
        %v1692 = vld [vmem:[#allocation31] sm:$0x1]
        %v1694 = vlaneseq
        %v1695 = vshrl.u32 %v1694, 7
        %v1696 = vsub.s32 0, %v1695
        %v1697 = vrot.slane %v1692, %v1696
        %v1699 = vmul.f32 %v1688, %v1697
        %v1700 = vmul.f32 %v1689, %v1697
        %v1701 = vmul.f32 %v1690, %v1697
        %v1702 = vmul.f32 %v1691, %v1697
        %v1703 = vsel %vm1078, %v1699, 0.0
        %1704 = vadd.xlane.f32.xlu0 %v1703
        %v1705 = vpop.xlane.xlu0 %1704
        %v1706 = vsel %vm1078, %v1700, 0.0
        %1707 = vadd.xlane.f32.xlu0 %v1706
        %v1708 = vpop.xlane.xlu0 %1707
        %v1709 = vsel %vm1078, %v1701, 0.0
        %1710 = vadd.xlane.f32.xlu0 %v1709
        %v1711 = vpop.xlane.xlu0 %1710
        %v1712 = vsel %vm1078, %v1702, 0.0
        %1713 = vadd.xlane.f32.xlu0 %v1712
        %v1714 = vpop.xlane.xlu0 %1713
        %v1715 = vld [vmem:[#allocation2] sm:$0x1]
        %v1717 = vlaneseq
        %v1718 = vshrl.u32 %v1717, 7
        %v1719 = vsub.s32 0, %v1718
        %v1720 = vrot.slane %v1715, %v1719
        %v1722 = vadd.f32 %v1705, %v1720
        %v1723 = vadd.f32 %v1708, %v1720
        %v1724 = vadd.f32 %v1711, %v1720
        %v1725 = vadd.f32 %v1714, %v1720
        %vm1726 = vcmp.gt.f32.partialorder %v1053, 0.0
        %vm1727 = vcmp.gt.f32.partialorder %v1054, 0.0
        %v1728 = vsel %vm1726, %v1722, -1e+30
        %v1729 = vsel %vm1727, %v1723, -1e+30
        %vm1730 = vcmask 7168
        %v1731 = vsel %vm1730, %v1728, -inf
        %v1732 = vsel %vm1730, %v1729, -inf
        %v1733 = vmax.f32 %v1731, %v1732
        %v1734 = vrot.slane %v1733, 4
        %v1735 = vmax.f32 %v1733, %v1734
        %v1736 = vrot.slane %v1735, 2
        %v1737 = vmax.f32 %v1735, %v1736
        %v1738 = vrot.slane %v1737, 1
        %v1739 = vmax.f32 %v1737, %v1738
        %v1740 = vsub.f32 %v1728, %v1739
        %v1741 = vsub.f32 %v1729, %v1739
        %v1742 = vmul.f32 %v1740, 1.442695
        %v1743 = vpow.pop %v1742
        %v1744 = vmul.f32 %v1741, 1.442695
        %v1745 = vpow.pop %v1744
        %v1746 = vmul.f32 %v1743, %v1053
        %v1747 = vmul.f32 %v1745, %v1054
        %v1748 = vsel %vm1730, %v1746, 0.0
        %v1749 = vsel %vm1730, %v1747, 0.0
        %v1750 = vadd.f32 %v1748, %v1749
        %v1751 = vrot.slane %v1750, 4
        %v1752 = vadd.f32 %v1750, %v1751
        %v1753 = vrot.slane %v1752, 2
        %v1754 = vadd.f32 %v1752, %v1753
        %v1755 = vrot.slane %v1754, 1
        %v1756 = vadd.f32 %v1754, %v1755
        %v1757 = vrcp.pop %v1756
        %v1758 = vmul.f32 %v1746, %v1757
        %v1759 = vmul.f32 %v1747, %v1757
        %1761 = vset.pattern.permute.xlu0 0
        %1762 = vperm.xlu0 %1761, %v1758
        %v1763 = vpop.permute.xlu0 %1762
        %1766 = vset.pattern.permute.xlu0 0
        %1767 = vperm.xlu0 %1766, %v1759
        %v1768 = vpop.permute.xlu0 %1767
        %v1770 = vmul.f32 %v1763, %v1447
        %v1771 = vmul.f32 %v1768, %v1448
        %v1772 = vsel %vm1540, %v1770, 0.0
        %v1773 = vsel %vm1540, %v1771, 0.0
        %v1774 = vadd.f32 %v1772, %v1773
        %v1775 = vrot.slane %v1774, 4
        %v1776 = vadd.f32 %v1774, %v1775
        %v1777 = vrot.slane %v1776, 2
        %v1778 = vadd.f32 %v1776, %v1777
        %v1779 = vrot.slane %v1778, 1
        %v1780 = vadd.f32 %v1778, %v1779
        %v1781 = vsel %vm1726, %v1724, -1e+30
        %v1782 = vsel %vm1727, %v1725, -1e+30
        %v1783 = vsel %vm1730, %v1781, -inf
        %v1784 = vsel %vm1730, %v1782, -inf
        %v1785 = vmax.f32 %v1783, %v1784
        %v1786 = vrot.slane %v1785, 4
        %v1787 = vmax.f32 %v1785, %v1786
        %v1788 = vrot.slane %v1787, 2
        %v1789 = vmax.f32 %v1787, %v1788
        %v1790 = vrot.slane %v1789, 1
        %v1791 = vmax.f32 %v1789, %v1790
        %v1792 = vsub.f32 %v1781, %v1791
        %v1793 = vsub.f32 %v1782, %v1791
        %v1794 = vmul.f32 %v1792, 1.442695
        %v1795 = vpow.pop %v1794
        %v1796 = vmul.f32 %v1793, 1.442695
        %v1797 = vpow.pop %v1796
        %v1798 = vmul.f32 %v1795, %v1053
        %v1799 = vmul.f32 %v1797, %v1054
        %v1800 = vsel %vm1730, %v1798, 0.0
        %v1801 = vsel %vm1730, %v1799, 0.0
        %v1802 = vadd.f32 %v1800, %v1801
        %v1803 = vrot.slane %v1802, 4
        %v1804 = vadd.f32 %v1802, %v1803
        %v1805 = vrot.slane %v1804, 2
        %v1806 = vadd.f32 %v1804, %v1805
        %v1807 = vrot.slane %v1806, 1
        %v1808 = vadd.f32 %v1806, %v1807
        %v1809 = vrcp.pop %v1808
        %v1810 = vmul.f32 %v1798, %v1809
        %v1811 = vmul.f32 %v1799, %v1809
        %1813 = vset.pattern.permute.xlu0 0
        %1814 = vperm.xlu0 %1813, %v1810
        %v1815 = vpop.permute.xlu0 %1814
        %1818 = vset.pattern.permute.xlu0 0
        %1819 = vperm.xlu0 %1818, %v1811
        %v1820 = vpop.permute.xlu0 %1819
        %v1822 = vmul.f32 %v1815, %v1449
        %v1823 = vmul.f32 %v1820, %v1450
        %v1824 = vsel %vm1540, %v1822, 0.0
        %v1825 = vsel %vm1540, %v1823, 0.0
        %v1826 = vadd.f32 %v1824, %v1825
        %v1827 = vrot.slane %v1826, 4
        %v1828 = vadd.f32 %v1826, %v1827
        %v1829 = vrot.slane %v1828, 2
        %v1830 = vadd.f32 %v1828, %v1829
        %v1831 = vrot.slane %v1830, 1
        %v1832 = vadd.f32 %v1830, %v1831
        %vm1833 = vcmask 1040384
        %v1834 = vsel %vm1833, %v1780, %v1832
        %v1835 = vpack.c.bf16 %v1834, %v1834
        %v1836 = vld [vmem:[#allocation33] sm:$0xf]
        %v1837 = vld [vmem:[#allocation33 + $0x4] sm:$0xf]
        %v1838 = vld [vmem:[#allocation34] sm:$0x1]
        %v1840 = vlaneseq
        %v1841 = vshrl.u32 %v1840, 7
        %v1842 = vsub.s32 0, %v1841
        %v1843 = vrot.slane %v1838, %v1842
        %v1847 = vunpack.c.l.b16 %v1836
        %v1848 = vunpack.c.l.b16 %v1837
        %v1849 = vpack.c.b16 %v1848, %v1847
        %v1852 = vsel %vm1540, %v1835, 0
        %1854 = vmatprep.subr.bf16.mxu0 0
        %1855 = vmatpush1.bf16.msra.mxu0 %v1849
        %1856 = vmatprep.subr.bf16.mxu0 0
        %1857 = vmatpush1.bf16.msra.mxu0 0
        %1858 = vmatprep.subr.bf16.mxu0 0
        %1859 = vmatpush1.bf16.msra.mxu0 0
        %1860 = vmatprep.subr.bf16.mxu0 0
        %1861 = vmatpush1.bf16.msra.mxu0 0
        %1862 = vmatprep.subr.bf16.mxu0 0
        %1863 = vmatpush1.bf16.msra.mxu0 0
        %1864 = vmatprep.subr.bf16.mxu0 0
        %1865 = vmatpush1.bf16.msra.mxu0 0
        %1866 = vmatprep.subr.bf16.mxu0 0
        %1867 = vmatpush1.bf16.msra.mxu0 0
        %1868 = vmatprep.subr.bf16.mxu0 0
        %1869 = vmatpush1.bf16.msra.mxu0 0
        %1870 = vmatprep.subr.bf16.mxu0 0
        %1871 = vmatpush1.bf16.msra.mxu0 0
        %1872 = vmatprep.subr.bf16.mxu0 0
        %1873 = vmatpush1.bf16.msra.mxu0 0
        %1874 = vmatprep.subr.bf16.mxu0 0
        %1875 = vmatpush1.bf16.msra.mxu0 0
        %1876 = vmatprep.subr.bf16.mxu0 0
        %1877 = vmatpush1.bf16.msra.mxu0 0
        %1878 = vmatprep.subr.bf16.mxu0 0
        %1879 = vmatpush1.bf16.msra.mxu0 0
        %1880 = vmatprep.subr.bf16.mxu0 0
        %1881 = vmatpush1.bf16.msra.mxu0 0
        %1882 = vmatprep.subr.bf16.mxu0 0
        %1883 = vmatpush1.bf16.msra.mxu0 0
        %1884 = vmatprep.subr.bf16.mxu0 0
        %1885 = vmatpush1.bf16.msra.mxu0 0
        %1886 = vmatprep.mubr.bf16.mxu0 0
        %1887 = vmatmul.mubr.bf16.gmra.mrb[0].mxu0 %v1852
        %v1888 = vpop.f32.mrb[0].mxu0
        %v1889 = vadd.f32 %v1843, %v1888
        %v1890 = vpop.f32.mrb[0].mxu0
        %v1891 = vpop.f32.mrb[0].mxu0
        %v1892 = vpop.f32.mrb[0].mxu0
        %1893 = vdwg.mxu0
        %v1894 = vmax.f32 %v1889, 0.0
        %v1895 = vld [vmem:[#allocation36] sm:$0x1]
        %v1897 = vlaneseq
        %v1898 = vshrl.u32 %v1897, 7
        %v1899 = vsub.s32 0, %v1898
        %v1900 = vrot.slane %v1895, %v1899
        %v1902 = vmul.f32 %v1894, %v1900
        %vm1903 = vcmask 58368
        %v1904 = vsel %vm1903, %v1902, 0.0
        %1905 = vadd.xlane.f32.xlu0 %v1904
        %v1906 = vpop.xlane.xlu0 %1905
        %v1907 = vld [vmem:[#allocation3] sm:$0x1]
        %v1909 = vlaneseq
        %v1910 = vshrl.u32 %v1909, 7
        %v1911 = vsub.s32 0, %v1910
        %v1912 = vrot.slane %v1907, %v1911
        %v1914 = vadd.f32 %v1906, %v1912
        %v1915 = vxor.u32 %v1914, 2147483648
        %v1916 = vmul.f32 %v1915, 1.442695
        %v1917 = vpow.pop %v1916
        %v1918 = vadd.f32 %v1917, 1.0
        %v1919 = vrcp.pop %v1918
        %v1920 = vmul.f32 1.0, %v1919
        %vm1921 = vcmask 1024
        %1922 = vst.msk [vmem:[%s1034] sm:$0x3] %vm1921, %v1920
        %1927 = vrot.lane.b32.xlu0 %v1345, 16
        %v1928 = vpop.permute.xlu0 %1927
        %1929 = vrot.lane.b32.xlu0 %v1348, 16
        %v1930 = vpop.permute.xlu0 %1929
        %1931 = vrot.lane.b32.xlu0 %v1353, 16
        %v1932 = vpop.permute.xlu0 %1931
        %1933 = vrot.lane.b32.xlu0 %v1356, 16
        %v1934 = vpop.permute.xlu0 %1933
        %1943 = vrot.lane.b32.xlu0 %v1417, 32
        %v1944 = vpop.permute.xlu0 %1943
        %1945 = vrot.lane.b32.xlu0 %v1420, 32
        %v1946 = vpop.permute.xlu0 %1945
        %1947 = vrot.lane.b32.xlu0 %v1425, 32
        %v1948 = vpop.permute.xlu0 %1947
        %1949 = vrot.lane.b32.xlu0 %v1428, 32
        %v1950 = vpop.permute.xlu0 %1949
        %v1955 = vsel %vm1540, %v1447, %v1928
        %v1956 = vsel %vm1540, %v1448, %v1930
        %v1957 = vsel %vm1540, %v1449, %v1932
        %v1958 = vsel %vm1540, %v1450, %v1934
        %v1959 = vsel %vm1078, %v1955, %v1944
        %v1960 = vsel %vm1078, %v1956, %v1946
        %v1961 = vsel %vm1078, %v1957, %v1948
        %v1962 = vsel %vm1078, %v1958, %v1950
        %vm1963 = vcmask 392192
        %1964 = vst.msk [vmem:[%s1041] sm:$0xff] %vm1963, %v1959
        %1965 = vst.msk [vmem:[%s1041 + $0x8] sm:$0xff] %vm1963, %v1960
        %1966 = vst.msk [vmem:[%s1041 + $0x10] sm:$0xff] %vm1963, %v1961
        %1967 = vst.msk [vmem:[%s1041 + $0x18] sm:$0xff] %vm1963, %v1962
        %s1968 = sand.u32 %s555, 1
        %s1969 = scalar_lea.sflag [#allocation6], %s1968
        %s1970 = sand.u32 %s555, 1
        %s1971 = smul.addr %s1970, 2
        %s1972 = scalar_lea.vmem [#allocation37], %s1971
        %s1973 = sand.u32 %s581, 1
        %s1974 = scalar_lea.sflag [#allocation39], %s1973
        %s1975 = sand.u32 %s581, 1
        %s1976 = smul.addr %s1975, 32
        %s1977 = scalar_lea.vmem [#allocation38], %s1976
        // Predicated region
        $region197: #{tpu_custom_call.1} parent=111 // pred_check
          %p1978 = pneg %p565
        $region198: #{tpu_custom_call.1} parent=111 // pred_check_branch
          %1980 = sbr.rel (%p1978) target = $region200
        $region199: #{tpu_custom_call.1} parent=111 // pred_region
          %s1982 = ssub.s32 32, 32
          %1983 = vsyncadd %s1969, %s1982
          %s1984 = smul.addr %s59, 32
          %s1985 = scalar_lea.hbm %s23, %s1984
          %s1987 = sshll.u32 %s1972, 4
          %s1988 = int_to_ptr.vmem [resolvable:$true] %s1987
          %1990 = dma.vmem_to_hbm [thread:$0]  %s1988, 32, %s1985, %s1969
        $region200: #{tpu_custom_call.1} parent=111 // pred_fallthru
          _
        // Predicated region
        $region201: #{tpu_custom_call.1} parent=111 // pred_check
          %p1991 = pneg %p591
        $region202: #{tpu_custom_call.1} parent=111 // pred_check_branch
          %1993 = sbr.rel (%p1991) target = $region204
        $region203: #{tpu_custom_call.1} parent=111 // pred_region
          %s1994 = smul.u32 4, %s59
          %s1996 = ssub.s32 512, 512
          %1997 = vsyncadd %s1974, %s1996
          %s1998 = smul.addr %s1994, 128
          %s1999 = scalar_lea.hbm %s24, %s1998
          %s2000 = sshll.u32 %s1977, 4
          %s2001 = int_to_ptr.vmem [resolvable:$true] %s2000
          %2006 = dma.vmem_to_hbm [thread:$0]  %s2001, 512, %s1999, %s1974, 128, 128, 8
        $region204: #{tpu_custom_call.1} parent=111 // pred_fallthru
          _
      $region112: #{tpu_custom_call.1} parent=5 // pred_fallthru
        _
      %p2007 = scmp.le.s32.totalorder 2, %s54
      // Predicated region
      $region205: #{tpu_custom_call.1} parent=5 // pred_check
        %p2008 = pneg %p2007
      $region206: #{tpu_custom_call.1} parent=5 // pred_check_branch
        %2010 = sbr.rel (%p2008) target = $region208
      $region207: #{tpu_custom_call.1} parent=5 // pred_region
        %s2011 = ssub.s32 %s54, 2
        // Predicated region
        $region209: #{tpu_custom_call.1} parent=207 // pred_check
          %p2012 = pneg %p571
        $region210: #{tpu_custom_call.1} parent=207 // pred_check_branch
          %2014 = sbr.rel (%p2012) target = $region212
        $region211: #{tpu_custom_call.1} parent=207 // pred_region
          %s2015 = sand.u32 %s556, 1
          %s2016 = scalar_lea.sflag [#allocation6], %s2015
          %s2017 = sand.u32 %s556, 1
          %s2018 = smul.addr %s2017, 2
          %s2019 = scalar_lea.vmem [#allocation37], %s2018
          %2020 = dma.done %s2016, 32
        $region212: #{tpu_custom_call.1} parent=207 // pred_fallthru
          _
        // Predicated region
        $region213: #{tpu_custom_call.1} parent=207 // pred_check
          %p2021 = pneg %p597
        $region214: #{tpu_custom_call.1} parent=207 // pred_check_branch
          %2023 = sbr.rel (%p2021) target = $region216
        $region215: #{tpu_custom_call.1} parent=207 // pred_region
          %s2024 = sand.u32 %s582, 1
          %s2025 = scalar_lea.sflag [#allocation39], %s2024
          %s2026 = sand.u32 %s582, 1
          %s2027 = smul.addr %s2026, 32
          %s2028 = scalar_lea.vmem [#allocation38], %s2027
          %2029 = dma.done %s2025, 512
        $region216: #{tpu_custom_call.1} parent=207 // pred_fallthru
          _
      $region208: #{tpu_custom_call.1} parent=5 // pred_fallthru
        _
    $region6: #{tpu_custom_call.1} parent=1 // loop_footer
      %s58 = sadd.s32 1, %s54
    $region7: #{tpu_custom_call.1} parent=1 // loop_footer_branch
      %53 = sbr.rel target = $region3
    $region8: #{tpu_custom_call.1} parent=1 // loop_exit
      _
    %2030 = vsyncpa [#allocation5], 1
    %s2031 = scalar_lea.sflag [#allocation5], 1
    %2032 = vsyncpa %s2031, 1
    %2033 = vsyncpa [#allocation8], 1
    %2034 = vsyncpa [#allocation11], 1
    %2035 = vsyncpa [#allocation14], 1
    %2036 = vsyncpa [#allocation17], 1
    %2037 = vsyncpa [#allocation20], 1
    %2038 = vsyncpa [#allocation23], 1
    %2039 = vsyncpa [#allocation26], 1
    %2040 = vsyncpa [#allocation29], 1
    %2041 = vsyncpa [#allocation32], 1
    %2042 = vsyncpa [#allocation35], 1
    %2043 = vsyncpa [#allocation6], 1
    %s2044 = scalar_lea.sflag [#allocation6], 1
    %2045 = vsyncpa %s2044, 1
    %2046 = vsyncpa [#allocation39], 1
    %s2047 = scalar_lea.sflag [#allocation39], 1
    %2048 = vsyncpa %s2047, 1

</llo_original>
